<compile_context>
chip_gen: v7x
topology: tpu7x:2x2x1
jax: 0.10.0
libtpu: 0.0.40
codegen_flags: <defaults>
</compile_context>

<pallas_src>
from typing import Callable, List

import jax
import jax.numpy as jnp
from jax.experimental import pallas as pl
from jax.experimental.pallas import tpu as pltpu

# ----------------------------------------------------------------------------
# Problem sizes (representative verification network)
# ----------------------------------------------------------------------------
N, C_IN, H, W = 2, 4, 16, 16      # NCHW input
C_OUT = 8                         # conv output channels
KH = KW = 3                       # conv kernel
PAD = 1                           # 'same' padding, stride 1
HIDDEN = 32                       # linear output features

LANES_ACT = C_OUT * W             # 128 -> lane-dense conv-activation width (co, w)
K_CONV = C_IN * W                 # 64  -> contraction width per di matmul (c, w)
K_FC = H * LANES_ACT              # 2048 -> fc contraction width
OUT_LANES = 128                   # lane-dense (zero-padded) kernel output width


# ----------------------------------------------------------------------------
# Fused kernel: conv3x3(pad=1) + bias + ReLU + flatten + linear, per batch tile
# ----------------------------------------------------------------------------
def _fused_net_kernel(x_ref, wc_ref, bc_ref, wf_ref, bf_ref, o_ref,
                      slab_ref, flat_ref):
    # x_ref   : [NB, C_IN, H, W]        raw NCHW input tile (no host-side prep)
    # wc_ref  : [3, C_IN*W, C_OUT*W]    banded per-di conv weights (dj shift +
    #                                   W zero-pad live in the weight as zeros)
    # bc_ref  : [1, C_OUT*W]            conv bias tiled to (co, w) lane order
    # wf_ref  : [H*C_OUT*W, 128]        fc weight in (h, co, w) flatten order,
    #                                   zero-padded to 128 output lanes
    # bf_ref  : [1, 128]
    # o_ref   : [NB, 128]               lane-dense output (cols >= HIDDEN are 0)
    # slab_ref: [NB, H+2, C_IN*W]       VMEM scratch: H-padded (n,h)x(c,w) slab
    # flat_ref: [NB, H*C_OUT*W]         VMEM scratch: lane-dense flattened acts
    nb = x_ref.shape[0]

    # --- layout: NCHW tile -> H-padded, (c,w)-lane-merged slab (all in VMEM) ---
    slab_ref[...] = jnp.zeros_like(slab_ref)
    for c in range(C_IN):
        slab_ref[:, PAD:PAD + H, c * W:(c + 1) * W] = x_ref[:, c, :, :]

    # --- conv: 3 banded dots (one per kernel row di), f32 accumulation -------
    acc = None
    for di in range(KH):
        # [nb, H, 64] -> [nb*H, 64]: tile-aligned leading-dim merge (H % 8 == 0)
        lhs = slab_ref[:, di:di + H, :].reshape(nb * H, K_CONV)
        term = jnp.dot(lhs, wc_ref[di], preferred_element_type=jnp.float32)
        acc = term if acc is None else acc + term

    # --- bias + ReLU (lane-dense [nb*H, 128], stays in vregs) ----------------
    act = jnp.maximum(acc + bc_ref[...], 0.0)

    # --- flatten: place row (n, h) into 128-aligned lane block h of image n ---
    act3 = act.reshape(nb, H, LANES_ACT)          # tile-aligned sublane split
    for h in range(H):
        flat_ref[:, h * LANES_ACT:(h + 1) * LANES_ACT] = act3[:, h, :]

    # --- linear: single K=2048 matmul, lane-padded output --------------------
    y = jnp.dot(flat_ref[...], wf_ref[...], preferred_element_type=jnp.float32)
    o_ref[...] = (y + bf_ref[...]).astype(o_ref.dtype)


# ----------------------------------------------------------------------------
# Wrapper: build-time weight preprocessing + pallas_call with a batch grid
# ----------------------------------------------------------------------------
def make_forward(conv_w, conv_b, fc_w, fc_b) -> Callable:
    """Build a jitted forward(x: [N,C,H,W]) -> [N,HIDDEN] around one fused kernel."""
    # ---- conv weights -> banded per-di [C_IN*W, C_OUT*W] matrices -----------
    # B_di[(c, w_in), (co, w_out)] = conv_w[co, c, di, w_in - w_out + 1]
    # (zero outside the band; W-boundary zero padding is implicit).
    shift = [jnp.eye(W, k=1 - dj, dtype=jnp.float32) for dj in range(KW)]
    w_conv_bd = jnp.stack([
        sum(jnp.kron(conv_w[:, :, di, dj].T, shift[dj]) for dj in range(KW))
        for di in range(KH)
    ])                                                          # [3, 64, 128]
    b_conv_row = jnp.repeat(conv_b, W)[None, :]                 # [1, 128] (co, w)

    # ---- fc weight: (o, co, h, w) -> rows in (h, co, w) order, lane-padded ---
    w_fc_flat = (fc_w.reshape(HIDDEN, C_OUT, H, W)
                     .transpose(2, 1, 3, 0)                     # [H, C_OUT, W, HID]
                     .reshape(K_FC, HIDDEN))
    w_fc_flat = jnp.pad(w_fc_flat, ((0, 0), (0, OUT_LANES - HIDDEN)))
    b_fc_row = jnp.pad(fc_b, (0, OUT_LANES - HIDDEN))[None, :]  # [1, 128]

    def forward(x):
        x = x.astype(jnp.float32)
        n = x.shape[0]
        # Batch tile: stream multiples of 8 images per grid step when possible
        # (weights stay VMEM-resident via constant index maps); otherwise one
        # block covering the whole (small) batch.
        nb = 8 if (n > 8 and n % 8 == 0) else n
        grid = (n // nb,)

        fused = pl.pallas_call(
            _fused_net_kernel,
            out_shape=jax.ShapeDtypeStruct((n, OUT_LANES), jnp.float32),
            grid=grid,
            in_specs=[
                pl.BlockSpec((nb, C_IN, H, W), lambda b: (b, 0, 0, 0)),
                pl.BlockSpec((KH, K_CONV, LANES_ACT), lambda b: (0, 0, 0)),
                pl.BlockSpec((1, LANES_ACT), lambda b: (0, 0)),
                pl.BlockSpec((K_FC, OUT_LANES), lambda b: (0, 0)),
                pl.BlockSpec((1, OUT_LANES), lambda b: (0, 0)),
            ],
            out_specs=pl.BlockSpec((nb, OUT_LANES), lambda b: (b, 0)),
            scratch_shapes=[
                pltpu.VMEM((nb, H + 2 * PAD, K_CONV), jnp.float32),
                pltpu.VMEM((nb, K_FC), jnp.float32),
            ],
            compiler_params=pltpu.CompilerParams(
                dimension_semantics=("parallel",)),
        )
        y = fused(x, w_conv_bd, b_conv_row, w_fc_flat, b_fc_row)
        return y[:, :HIDDEN]

    return jax.jit(forward)


# ----------------------------------------------------------------------------
# Graph executor mirroring dnnv PytorchModel.forward (cache + computation stack)
# ----------------------------------------------------------------------------
class JaxOperation:
    def __init__(self, name: str, fn: Callable, inputs: List[str], outputs: List[str]):
        assert len(outputs) == 1
        self.name = name
        self.fn = fn
        self.inputs = inputs
        self.outputs = outputs


class PallasModel:
    def __init__(self, operations: List[JaxOperation], inputs: List[str], outputs: List[str]):
        self.graph = {op.name: op for op in operations}
        self.inputs = inputs
        self.outputs = outputs

    def __call__(self, *x):
        assert len(x) == len(self.inputs)
        cache = {n: x_ for n, x_ in zip(self.inputs, x)}
        computation_stack = [n for n in reversed(self.outputs)]
        while computation_stack:
            name = computation_stack.pop()
            op = self.graph[name]
            if all(inp in cache for inp in op.inputs):
                cache[op.outputs[0]] = op.fn(*[cache[inp] for inp in op.inputs])
            else:
                computation_stack.append(name)
                for inp in op.inputs:
                    if inp not in cache:
                        computation_stack.append(inp)
        return tuple(cache[o] for o in self.outputs)


# ----------------------------------------------------------------------------
# Pure-JAX reference for a correctness spot-check
# ----------------------------------------------------------------------------
def reference_forward(x, params):
    conv_w, conv_b, fc_w, fc_b = params
    y = jax.lax.conv_general_dilated(
        x, conv_w, window_strides=(1, 1), padding=((PAD, PAD), (PAD, PAD)),
        dimension_numbers=("NCHW", "OIHW", "NCHW"),
        precision=jax.lax.Precision.HIGHEST)
    y = jnp.maximum(y + conv_b[None, :, None, None], 0.0)
    y = y.reshape(y.shape[0], -1)
    return jnp.matmul(y, fc_w.T, precision=jax.lax.Precision.HIGHEST) + fc_b


if __name__ == "__main__":
    key = jax.random.PRNGKey(0)
    k1, k2, k3, k4, k5 = jax.random.split(key, 5)

    conv_w = jax.random.normal(k1, (C_OUT, C_IN, KH, KW), jnp.float32) * 0.1
    conv_b = jax.random.normal(k2, (C_OUT,), jnp.float32) * 0.1
    fc_w = jax.random.normal(k3, (HIDDEN, C_OUT * H * W), jnp.float32) * 0.05
    fc_b = jax.random.normal(k4, (HIDDEN,), jnp.float32) * 0.05

    forward = make_forward(conv_w, conv_b, fc_w, fc_b)
    # dnnv keys the graph by the value name an op produces; one fused op here.
    model = PallasModel(
        [JaxOperation("output", forward, inputs=["input"], outputs=["output"])],
        inputs=["input"], outputs=["output"])

    x = jax.random.normal(k5, (N, C_IN, H, W), jnp.float32)

    (out,) = model(x)
    out = jax.block_until_ready(out)

    ref = jax.block_until_ready(reference_forward(x, (conv_w, conv_b, fc_w, fc_b)))
    assert out.shape == (N, HIDDEN)
    # Tolerance is loose enough to absorb the MXU's default f32-matmul pass
    # rounding while still catching any layout / banding / permutation bug
    # (those produce O(1) errors at this output scale of ~2-3).
    err = float(jnp.max(jnp.abs(out - ref)))
    assert err < 5e-2, f"mismatch vs pure-JAX reference: {err}"

    print("KERNEL_OK")
</pallas_src>

<mosaic_0001>
module attributes {stable_mosaic.version = 11 : i64} {
  func.func @_fused_net_kernel(%arg0: i32, %arg1: memref<2x4x16x16xf32, #tpu.memory_space<vmem>>, %arg2: memref<3x64x128xf32, #tpu.memory_space<vmem>>, %arg3: memref<1x128xf32, #tpu.memory_space<vmem>>, %arg4: memref<2048x128xf32, #tpu.memory_space<vmem>>, %arg5: memref<1x128xf32, #tpu.memory_space<vmem>>, %arg6: memref<2x128xf32, #tpu.memory_space<vmem>>, %arg7: memref<2x18x64xf32, #tpu.memory_space<vmem>>, %arg8: memref<2x2048xf32, #tpu.memory_space<vmem>>) attributes {dimension_semantics = [#tpu.dimension_semantics<parallel>], iteration_bounds = array<i64: 1>, scalar_prefetch = 0 : i64, scratch_operands = 2 : i64, tpu.core_type = #tpu.core_type<tc>, window_params = [{transform_indices = @transform_0, window_bounds = array<i64: 2, 4, 16, 16>}, {pipeline_mode = #tpu.pipeline_mode<synchronous>, transform_indices = @transform_1, window_bounds = array<i64: 3, 64, 128>}, {pipeline_mode = #tpu.pipeline_mode<synchronous>, transform_indices = @transform_2, window_bounds = array<i64: 1, 128>}, {pipeline_mode = #tpu.pipeline_mode<synchronous>, transform_indices = @transform_3, window_bounds = array<i64: 2048, 128>}, {pipeline_mode = #tpu.pipeline_mode<synchronous>, transform_indices = @transform_4, window_bounds = array<i64: 1, 128>}, {transform_indices = @transform_5, window_bounds = array<i64: 2, 128>}]} {
    %cst = arith.constant 0.000000e+00 : f32
    %0 = vector.broadcast %cst : f32 to vector<2x18x64xf32>
    %c0 = arith.constant 0 : index
    %c0_0 = arith.constant 0 : index
    %c0_1 = arith.constant 0 : index
    %1 = vector.load %arg7[%c0, %c0_0, %c0_1] : memref<2x18x64xf32, #tpu.memory_space<vmem>>, vector<2x18x64xf32>
    tpu.vector_store %arg7[%c0, %c0_0, %c0_1], %0 {strides = array<i32>} : memref<2x18x64xf32, #tpu.memory_space<vmem>>, vector<2x18x64xf32>,
    %c0_2 = arith.constant 0 : index
    %c0_3 = arith.constant 0 : index
    %c0_4 = arith.constant 0 : index
    %c0_5 = arith.constant 0 : index
    %2 = vector.load %arg1[%c0_2, %c0_3, %c0_4, %c0_5] : memref<2x4x16x16xf32, #tpu.memory_space<vmem>>, vector<2x1x16x16xf32>
    %3 = vector.shape_cast %2 : vector<2x1x16x16xf32> to vector<2x16x16xf32>
    %c0_6 = arith.constant 0 : index
    %c1 = arith.constant 1 : index
    %c0_7 = arith.constant 0 : index
    %4 = vector.load %arg7[%c0_6, %c1, %c0_7] : memref<2x18x64xf32, #tpu.memory_space<vmem>>, vector<2x16x16xf32>
    tpu.vector_store %arg7[%c0_6, %c1, %c0_7], %3 {strides = array<i32>} : memref<2x18x64xf32, #tpu.memory_space<vmem>>, vector<2x16x16xf32>,
    %c0_8 = arith.constant 0 : index
    %c1_9 = arith.constant 1 : index
    %c0_10 = arith.constant 0 : index
    %c0_11 = arith.constant 0 : index
    %5 = vector.load %arg1[%c0_8, %c1_9, %c0_10, %c0_11] : memref<2x4x16x16xf32, #tpu.memory_space<vmem>>, vector<2x1x16x16xf32>
    %6 = vector.shape_cast %5 : vector<2x1x16x16xf32> to vector<2x16x16xf32>
    %c0_12 = arith.constant 0 : index
    %c1_13 = arith.constant 1 : index
    %c16 = arith.constant 16 : index
    %7 = vector.load %arg7[%c0_12, %c1_13, %c16] : memref<2x18x64xf32, #tpu.memory_space<vmem>>, vector<2x16x16xf32>
    tpu.vector_store %arg7[%c0_12, %c1_13, %c16], %6 {strides = array<i32>} : memref<2x18x64xf32, #tpu.memory_space<vmem>>, vector<2x16x16xf32>,
    %c0_14 = arith.constant 0 : index
    %c2 = arith.constant 2 : index
    %c0_15 = arith.constant 0 : index
    %c0_16 = arith.constant 0 : index
    %8 = vector.load %arg1[%c0_14, %c2, %c0_15, %c0_16] : memref<2x4x16x16xf32, #tpu.memory_space<vmem>>, vector<2x1x16x16xf32>
    %9 = vector.shape_cast %8 : vector<2x1x16x16xf32> to vector<2x16x16xf32>
    %c0_17 = arith.constant 0 : index
    %c1_18 = arith.constant 1 : index
    %c32 = arith.constant 32 : index
    %10 = vector.load %arg7[%c0_17, %c1_18, %c32] : memref<2x18x64xf32, #tpu.memory_space<vmem>>, vector<2x16x16xf32>
    tpu.vector_store %arg7[%c0_17, %c1_18, %c32], %9 {strides = array<i32>} : memref<2x18x64xf32, #tpu.memory_space<vmem>>, vector<2x16x16xf32>,
    %c0_19 = arith.constant 0 : index
    %c3 = arith.constant 3 : index
    %c0_20 = arith.constant 0 : index
    %c0_21 = arith.constant 0 : index
    %11 = vector.load %arg1[%c0_19, %c3, %c0_20, %c0_21] : memref<2x4x16x16xf32, #tpu.memory_space<vmem>>, vector<2x1x16x16xf32>
    %12 = vector.shape_cast %11 : vector<2x1x16x16xf32> to vector<2x16x16xf32>
    %c0_22 = arith.constant 0 : index
    %c1_23 = arith.constant 1 : index
    %c48 = arith.constant 48 : index
    %13 = vector.load %arg7[%c0_22, %c1_23, %c48] : memref<2x18x64xf32, #tpu.memory_space<vmem>>, vector<2x16x16xf32>
    tpu.vector_store %arg7[%c0_22, %c1_23, %c48], %12 {strides = array<i32>} : memref<2x18x64xf32, #tpu.memory_space<vmem>>, vector<2x16x16xf32>,
    %c0_24 = arith.constant 0 : index
    %c0_25 = arith.constant 0 : index
    %c0_26 = arith.constant 0 : index
    %14 = vector.load %arg7[%c0_24, %c0_25, %c0_26] : memref<2x18x64xf32, #tpu.memory_space<vmem>>, vector<2x16x64xf32>
    %15 = vector.shape_cast %14 : vector<2x16x64xf32> to vector<32x64xf32>
    %c0_27 = arith.constant 0 : index
    %c0_28 = arith.constant 0 : index
    %c0_29 = arith.constant 0 : index
    %16 = vector.load %arg2[%c0_27, %c0_28, %c0_29] : memref<3x64x128xf32, #tpu.memory_space<vmem>>, vector<1x64x128xf32>
    %17 = vector.shape_cast %16 : vector<1x64x128xf32> to vector<64x128xf32>
    %cst_30 = arith.constant dense<0.000000e+00> : vector<32x128xf32>
    %18 = tpu.matmul %15, %17, %cst_30 {dimension_numbers = #tpu.dot_dimension_numbers<[1], [0], [0], [1], [0, 0, 1, 1], [], []>} : vector<32x64xf32>, vector<64x128xf32>, vector<32x128xf32> -> vector<32x128xf32>
    %c0_31 = arith.constant 0 : index
    %c1_32 = arith.constant 1 : index
    %c0_33 = arith.constant 0 : index
    %19 = vector.load %arg7[%c0_31, %c1_32, %c0_33] : memref<2x18x64xf32, #tpu.memory_space<vmem>>, vector<2x16x64xf32>
    %20 = vector.shape_cast %19 : vector<2x16x64xf32> to vector<32x64xf32>
    %c1_34 = arith.constant 1 : index
    %c0_35 = arith.constant 0 : index
    %c0_36 = arith.constant 0 : index
    %21 = vector.load %arg2[%c1_34, %c0_35, %c0_36] : memref<3x64x128xf32, #tpu.memory_space<vmem>>, vector<1x64x128xf32>
    %22 = vector.shape_cast %21 : vector<1x64x128xf32> to vector<64x128xf32>
    %cst_37 = arith.constant dense<0.000000e+00> : vector<32x128xf32>
    %23 = tpu.matmul %20, %22, %cst_37 {dimension_numbers = #tpu.dot_dimension_numbers<[1], [0], [0], [1], [0, 0, 1, 1], [], []>} : vector<32x64xf32>, vector<64x128xf32>, vector<32x128xf32> -> vector<32x128xf32>
    %24 = arith.addf %18, %23 : vector<32x128xf32>
    %c0_38 = arith.constant 0 : index
    %c2_39 = arith.constant 2 : index
    %c0_40 = arith.constant 0 : index
    %25 = vector.load %arg7[%c0_38, %c2_39, %c0_40] : memref<2x18x64xf32, #tpu.memory_space<vmem>>, vector<2x16x64xf32>
    %26 = vector.shape_cast %25 : vector<2x16x64xf32> to vector<32x64xf32>
    %c2_41 = arith.constant 2 : index
    %c0_42 = arith.constant 0 : index
    %c0_43 = arith.constant 0 : index
    %27 = vector.load %arg2[%c2_41, %c0_42, %c0_43] : memref<3x64x128xf32, #tpu.memory_space<vmem>>, vector<1x64x128xf32>
    %28 = vector.shape_cast %27 : vector<1x64x128xf32> to vector<64x128xf32>
    %cst_44 = arith.constant dense<0.000000e+00> : vector<32x128xf32>
    %29 = tpu.matmul %26, %28, %cst_44 {dimension_numbers = #tpu.dot_dimension_numbers<[1], [0], [0], [1], [0, 0, 1, 1], [], []>} : vector<32x64xf32>, vector<64x128xf32>, vector<32x128xf32> -> vector<32x128xf32>
    %30 = arith.addf %24, %29 : vector<32x128xf32>
    %c0_45 = arith.constant 0 : index
    %c0_46 = arith.constant 0 : index
    %31 = vector.load %arg3[%c0_45, %c0_46] : memref<1x128xf32, #tpu.memory_space<vmem>>, vector<1x128xf32>
    %32 = vector.broadcast %31 : vector<1x128xf32> to vector<32x128xf32>
    %33 = arith.addf %30, %32 : vector<32x128xf32>
    %cst_47 = arith.constant 0.000000e+00 : f32
    %34 = vector.broadcast %cst_47 : f32 to vector<32x128xf32>
    %35 = arith.maximumf %33, %34 : vector<32x128xf32>
    %36 = vector.shape_cast %35 : vector<32x128xf32> to vector<2x16x128xf32>
    %37 = vector.extract_strided_slice %36 {offsets = [0, 0, 0], sizes = [2, 1, 128], strides = [1, 1, 1]} : vector<2x16x128xf32> to vector<2x1x128xf32>
    %38 = vector.shape_cast %37 : vector<2x1x128xf32> to vector<2x128xf32>
    %c0_48 = arith.constant 0 : index
    %c0_49 = arith.constant 0 : index
    %39 = vector.load %arg8[%c0_48, %c0_49] : memref<2x2048xf32, #tpu.memory_space<vmem>>, vector<2x128xf32>
    tpu.vector_store %arg8[%c0_48, %c0_49], %38 {strides = array<i32>} : memref<2x2048xf32, #tpu.memory_space<vmem>>, vector<2x128xf32>,
    %40 = vector.extract_strided_slice %36 {offsets = [0, 1, 0], sizes = [2, 1, 128], strides = [1, 1, 1]} : vector<2x16x128xf32> to vector<2x1x128xf32>
    %41 = vector.shape_cast %40 : vector<2x1x128xf32> to vector<2x128xf32>
    %c0_50 = arith.constant 0 : index
    %c128 = arith.constant 128 : index
    %42 = vector.load %arg8[%c0_50, %c128] : memref<2x2048xf32, #tpu.memory_space<vmem>>, vector<2x128xf32>
    tpu.vector_store %arg8[%c0_50, %c128], %41 {strides = array<i32>} : memref<2x2048xf32, #tpu.memory_space<vmem>>, vector<2x128xf32>,
    %43 = vector.extract_strided_slice %36 {offsets = [0, 2, 0], sizes = [2, 1, 128], strides = [1, 1, 1]} : vector<2x16x128xf32> to vector<2x1x128xf32>
    %44 = vector.shape_cast %43 : vector<2x1x128xf32> to vector<2x128xf32>
    %c0_51 = arith.constant 0 : index
    %c256 = arith.constant 256 : index
    %45 = vector.load %arg8[%c0_51, %c256] : memref<2x2048xf32, #tpu.memory_space<vmem>>, vector<2x128xf32>
    tpu.vector_store %arg8[%c0_51, %c256], %44 {strides = array<i32>} : memref<2x2048xf32, #tpu.memory_space<vmem>>, vector<2x128xf32>,
    %46 = vector.extract_strided_slice %36 {offsets = [0, 3, 0], sizes = [2, 1, 128], strides = [1, 1, 1]} : vector<2x16x128xf32> to vector<2x1x128xf32>
    %47 = vector.shape_cast %46 : vector<2x1x128xf32> to vector<2x128xf32>
    %c0_52 = arith.constant 0 : index
    %c384 = arith.constant 384 : index
    %48 = vector.load %arg8[%c0_52, %c384] : memref<2x2048xf32, #tpu.memory_space<vmem>>, vector<2x128xf32>
    tpu.vector_store %arg8[%c0_52, %c384], %47 {strides = array<i32>} : memref<2x2048xf32, #tpu.memory_space<vmem>>, vector<2x128xf32>,
    %49 = vector.extract_strided_slice %36 {offsets = [0, 4, 0], sizes = [2, 1, 128], strides = [1, 1, 1]} : vector<2x16x128xf32> to vector<2x1x128xf32>
    %50 = vector.shape_cast %49 : vector<2x1x128xf32> to vector<2x128xf32>
    %c0_53 = arith.constant 0 : index
    %c512 = arith.constant 512 : index
    %51 = vector.load %arg8[%c0_53, %c512] : memref<2x2048xf32, #tpu.memory_space<vmem>>, vector<2x128xf32>
    tpu.vector_store %arg8[%c0_53, %c512], %50 {strides = array<i32>} : memref<2x2048xf32, #tpu.memory_space<vmem>>, vector<2x128xf32>,
    %52 = vector.extract_strided_slice %36 {offsets = [0, 5, 0], sizes = [2, 1, 128], strides = [1, 1, 1]} : vector<2x16x128xf32> to vector<2x1x128xf32>
    %53 = vector.shape_cast %52 : vector<2x1x128xf32> to vector<2x128xf32>
    %c0_54 = arith.constant 0 : index
    %c640 = arith.constant 640 : index
    %54 = vector.load %arg8[%c0_54, %c640] : memref<2x2048xf32, #tpu.memory_space<vmem>>, vector<2x128xf32>
    tpu.vector_store %arg8[%c0_54, %c640], %53 {strides = array<i32>} : memref<2x2048xf32, #tpu.memory_space<vmem>>, vector<2x128xf32>,
    %55 = vector.extract_strided_slice %36 {offsets = [0, 6, 0], sizes = [2, 1, 128], strides = [1, 1, 1]} : vector<2x16x128xf32> to vector<2x1x128xf32>
    %56 = vector.shape_cast %55 : vector<2x1x128xf32> to vector<2x128xf32>
    %c0_55 = arith.constant 0 : index
    %c768 = arith.constant 768 : index
    %57 = vector.load %arg8[%c0_55, %c768] : memref<2x2048xf32, #tpu.memory_space<vmem>>, vector<2x128xf32>
    tpu.vector_store %arg8[%c0_55, %c768], %56 {strides = array<i32>} : memref<2x2048xf32, #tpu.memory_space<vmem>>, vector<2x128xf32>,
    %58 = vector.extract_strided_slice %36 {offsets = [0, 7, 0], sizes = [2, 1, 128], strides = [1, 1, 1]} : vector<2x16x128xf32> to vector<2x1x128xf32>
    %59 = vector.shape_cast %58 : vector<2x1x128xf32> to vector<2x128xf32>
    %c0_56 = arith.constant 0 : index
    %c896 = arith.constant 896 : index
    %60 = vector.load %arg8[%c0_56, %c896] : memref<2x2048xf32, #tpu.memory_space<vmem>>, vector<2x128xf32>
    tpu.vector_store %arg8[%c0_56, %c896], %59 {strides = array<i32>} : memref<2x2048xf32, #tpu.memory_space<vmem>>, vector<2x128xf32>,
    %61 = vector.extract_strided_slice %36 {offsets = [0, 8, 0], sizes = [2, 1, 128], strides = [1, 1, 1]} : vector<2x16x128xf32> to vector<2x1x128xf32>
    %62 = vector.shape_cast %61 : vector<2x1x128xf32> to vector<2x128xf32>
    %c0_57 = arith.constant 0 : index
    %c1024 = arith.constant 1024 : index
    %63 = vector.load %arg8[%c0_57, %c1024] : memref<2x2048xf32, #tpu.memory_space<vmem>>, vector<2x128xf32>
    tpu.vector_store %arg8[%c0_57, %c1024], %62 {strides = array<i32>} : memref<2x2048xf32, #tpu.memory_space<vmem>>, vector<2x128xf32>,
    %64 = vector.extract_strided_slice %36 {offsets = [0, 9, 0], sizes = [2, 1, 128], strides = [1, 1, 1]} : vector<2x16x128xf32> to vector<2x1x128xf32>
    %65 = vector.shape_cast %64 : vector<2x1x128xf32> to vector<2x128xf32>
    %c0_58 = arith.constant 0 : index
    %c1152 = arith.constant 1152 : index
    %66 = vector.load %arg8[%c0_58, %c1152] : memref<2x2048xf32, #tpu.memory_space<vmem>>, vector<2x128xf32>
    tpu.vector_store %arg8[%c0_58, %c1152], %65 {strides = array<i32>} : memref<2x2048xf32, #tpu.memory_space<vmem>>, vector<2x128xf32>,
    %67 = vector.extract_strided_slice %36 {offsets = [0, 10, 0], sizes = [2, 1, 128], strides = [1, 1, 1]} : vector<2x16x128xf32> to vector<2x1x128xf32>
    %68 = vector.shape_cast %67 : vector<2x1x128xf32> to vector<2x128xf32>
    %c0_59 = arith.constant 0 : index
    %c1280 = arith.constant 1280 : index
    %69 = vector.load %arg8[%c0_59, %c1280] : memref<2x2048xf32, #tpu.memory_space<vmem>>, vector<2x128xf32>
    tpu.vector_store %arg8[%c0_59, %c1280], %68 {strides = array<i32>} : memref<2x2048xf32, #tpu.memory_space<vmem>>, vector<2x128xf32>,
    %70 = vector.extract_strided_slice %36 {offsets = [0, 11, 0], sizes = [2, 1, 128], strides = [1, 1, 1]} : vector<2x16x128xf32> to vector<2x1x128xf32>
    %71 = vector.shape_cast %70 : vector<2x1x128xf32> to vector<2x128xf32>
    %c0_60 = arith.constant 0 : index
    %c1408 = arith.constant 1408 : index
    %72 = vector.load %arg8[%c0_60, %c1408] : memref<2x2048xf32, #tpu.memory_space<vmem>>, vector<2x128xf32>
    tpu.vector_store %arg8[%c0_60, %c1408], %71 {strides = array<i32>} : memref<2x2048xf32, #tpu.memory_space<vmem>>, vector<2x128xf32>,
    %73 = vector.extract_strided_slice %36 {offsets = [0, 12, 0], sizes = [2, 1, 128], strides = [1, 1, 1]} : vector<2x16x128xf32> to vector<2x1x128xf32>
    %74 = vector.shape_cast %73 : vector<2x1x128xf32> to vector<2x128xf32>
    %c0_61 = arith.constant 0 : index
    %c1536 = arith.constant 1536 : index
    %75 = vector.load %arg8[%c0_61, %c1536] : memref<2x2048xf32, #tpu.memory_space<vmem>>, vector<2x128xf32>
    tpu.vector_store %arg8[%c0_61, %c1536], %74 {strides = array<i32>} : memref<2x2048xf32, #tpu.memory_space<vmem>>, vector<2x128xf32>,
    %76 = vector.extract_strided_slice %36 {offsets = [0, 13, 0], sizes = [2, 1, 128], strides = [1, 1, 1]} : vector<2x16x128xf32> to vector<2x1x128xf32>
    %77 = vector.shape_cast %76 : vector<2x1x128xf32> to vector<2x128xf32>
    %c0_62 = arith.constant 0 : index
    %c1664 = arith.constant 1664 : index
    %78 = vector.load %arg8[%c0_62, %c1664] : memref<2x2048xf32, #tpu.memory_space<vmem>>, vector<2x128xf32>
    tpu.vector_store %arg8[%c0_62, %c1664], %77 {strides = array<i32>} : memref<2x2048xf32, #tpu.memory_space<vmem>>, vector<2x128xf32>,
    %79 = vector.extract_strided_slice %36 {offsets = [0, 14, 0], sizes = [2, 1, 128], strides = [1, 1, 1]} : vector<2x16x128xf32> to vector<2x1x128xf32>
    %80 = vector.shape_cast %79 : vector<2x1x128xf32> to vector<2x128xf32>
    %c0_63 = arith.constant 0 : index
    %c1792 = arith.constant 1792 : index
    %81 = vector.load %arg8[%c0_63, %c1792] : memref<2x2048xf32, #tpu.memory_space<vmem>>, vector<2x128xf32>
    tpu.vector_store %arg8[%c0_63, %c1792], %80 {strides = array<i32>} : memref<2x2048xf32, #tpu.memory_space<vmem>>, vector<2x128xf32>,
    %82 = vector.extract_strided_slice %36 {offsets = [0, 15, 0], sizes = [2, 1, 128], strides = [1, 1, 1]} : vector<2x16x128xf32> to vector<2x1x128xf32>
    %83 = vector.shape_cast %82 : vector<2x1x128xf32> to vector<2x128xf32>
    %c0_64 = arith.constant 0 : index
    %c1920 = arith.constant 1920 : index
    %84 = vector.load %arg8[%c0_64, %c1920] : memref<2x2048xf32, #tpu.memory_space<vmem>>, vector<2x128xf32>
    tpu.vector_store %arg8[%c0_64, %c1920], %83 {strides = array<i32>} : memref<2x2048xf32, #tpu.memory_space<vmem>>, vector<2x128xf32>,
    %c0_65 = arith.constant 0 : index
    %c0_66 = arith.constant 0 : index
    %85 = vector.load %arg8[%c0_65, %c0_66] : memref<2x2048xf32, #tpu.memory_space<vmem>>, vector<2x2048xf32>
    %c0_67 = arith.constant 0 : index
    %c0_68 = arith.constant 0 : index
    %86 = vector.load %arg4[%c0_67, %c0_68] : memref<2048x128xf32, #tpu.memory_space<vmem>>, vector<2048x128xf32>
    %cst_69 = arith.constant dense<0.000000e+00> : vector<2x128xf32>
    %87 = tpu.matmul %85, %86, %cst_69 {dimension_numbers = #tpu.dot_dimension_numbers<[1], [0], [0], [1], [0, 0, 1, 1], [], []>} : vector<2x2048xf32>, vector<2048x128xf32>, vector<2x128xf32> -> vector<2x128xf32>
    %c0_70 = arith.constant 0 : index
    %c0_71 = arith.constant 0 : index
    %88 = vector.load %arg5[%c0_70, %c0_71] : memref<1x128xf32, #tpu.memory_space<vmem>>, vector<1x128xf32>
    %89 = vector.broadcast %88 : vector<1x128xf32> to vector<2x128xf32>
    %90 = arith.addf %87, %89 : vector<2x128xf32>
    %c0_72 = arith.constant 0 : index
    %c0_73 = arith.constant 0 : index
    %91 = vector.load %arg6[%c0_72, %c0_73] : memref<2x128xf32, #tpu.memory_space<vmem>>, vector<2x128xf32>
    tpu.vector_store %arg6[%c0_72, %c0_73], %90 {strides = array<i32>} : memref<2x128xf32, #tpu.memory_space<vmem>>, vector<2x128xf32>,
    return
  }
  func.func @transform_0(%arg0: i32) -> (i32, i32, i32, i32) {
    %c0_i32 = arith.constant 0 : i32
    %c0_i32_0 = arith.constant 0 : i32
    %c0_i32_1 = arith.constant 0 : i32
    %c0_i32_2 = arith.constant 0 : i32
    return %arg0, %c0_i32, %c0_i32_0, %c0_i32_1 : i32, i32, i32, i32
  }
  func.func @transform_1(%arg0: i32) -> (i32, i32, i32) {
    %c0_i32 = arith.constant 0 : i32
    %c0_i32_0 = arith.constant 0 : i32
    %c0_i32_1 = arith.constant 0 : i32
    %c0_i32_2 = arith.constant 0 : i32
    return %c0_i32, %c0_i32_0, %c0_i32_1 : i32, i32, i32
  }
  func.func @transform_2(%arg0: i32) -> (i32, i32) {
    %c0_i32 = arith.constant 0 : i32
    %c0_i32_0 = arith.constant 0 : i32
    %c0_i32_1 = arith.constant 0 : i32
    return %c0_i32, %c0_i32_0 : i32, i32
  }
  func.func @transform_3(%arg0: i32) -> (i32, i32) {
    %c0_i32 = arith.constant 0 : i32
    %c0_i32_0 = arith.constant 0 : i32
    %c0_i32_1 = arith.constant 0 : i32
    return %c0_i32, %c0_i32_0 : i32, i32
  }
  func.func @transform_4(%arg0: i32) -> (i32, i32) {
    %c0_i32 = arith.constant 0 : i32
    %c0_i32_0 = arith.constant 0 : i32
    %c0_i32_1 = arith.constant 0 : i32
    return %c0_i32, %c0_i32_0 : i32, i32
  }
  func.func @transform_5(%arg0: i32) -> (i32, i32) {
    %c0_i32 = arith.constant 0 : i32
    %c0_i32_0 = arith.constant 0 : i32
    return %arg0, %c0_i32 : i32, i32
  }
}

</mosaic_0001>

<llo_original>
// kernel: forward.1
$region0: #{forward.1}
  #allocation0 [shape = 'u32[]', space=smem, size = 0x4, offset = 0x4, fixed_abs, tag = 'smem constant byte address 0x4 - core index']
  #allocation1 [shape = 'u32[144,128]{1,0:T(1,128)}', space=vmem, size = 0x12000, scoped, tag = 'internal scratch']
  #allocation2 [shape = 'f32[2,18,64]{2,1,0:T(8,128)}', space=vmem, size = 0x6000, scoped, tag = 'scratch operand']
  #allocation3 [shape = 'f32[2,2048]{1,0:T(2,128)}', space=vmem, size = 0x4000, scoped, tag = 'scratch operand']
  %s0 = inlined_call_operand.hbm [shape: f32[2,4,16,16], index: 0, kind: input, shape index: {}]
  %s1 = inlined_call_operand.hbm [shape: f32[3,64,128], index: 1, kind: input, shape index: {}]
  %s2 = inlined_call_operand.vmem [shape: f32[1,128], index: 2, kind: input, shape index: {}]
  %s3 = inlined_call_operand.hbm [shape: f32[2048,128], index: 3, kind: input, shape index: {}]
  %s4 = inlined_call_operand.vmem [shape: f32[1,128], index: 4, kind: input, shape index: {}]
  %s5 = inlined_call_operand.hbm [shape: f32[2,128], index: 5, kind: output, shape index: {}]
  %s6 = sld [smem:[#allocation0]]
  $region42: #{forward.1} parent=0
    _
  %s8 = ssub.s32 1, %s6
  %s9 = scalar_select 0, %s8, %s6
  $region1: #{forward.1} parent=0
    #allocation4 [shape = 'u8[65536]{0}', space=vmem, size = 0x10000, scoped, tag = 'input window, operand 0, single buffered']
    #allocation5 [shape = 's32[1]{0}', space=sflag, size = 0x4, scoped, tag = 'scoped memory for forward.1']
    #allocation6 [shape = 's32[1]{0}', space=sflag, size = 0x4, scoped, tag = 'scoped memory for forward.1']
    #allocation7 [shape = 'u8[98304]{0}', space=vmem, size = 0x18000, scoped, tag = 'input window, operand 1, single buffered']
    #allocation8 [shape = 's32[1]{0}', space=sflag, size = 0x4, scoped, tag = 'scoped memory for forward.1']
    #allocation9 [shape = 'u8[1048576]{0}', space=vmem, size = 0x100000, scoped, tag = 'input window, operand 3, single buffered']
    #allocation10 [shape = 'u8[1024]{0}', space=vmem, size = 0x400, scoped, tag = 'output window, operand 0, single buffered']
    %10 = vsyncpa [#allocation5], 0
    %11 = vsyncpa [#allocation8], 0
    %12 = vsyncpa [#allocation6], 0
    // Predicated region
    $region2: #{forward.1} parent=1 // pred_check
      _
    $region3: #{forward.1} parent=1 // pred_check_branch
      %14 = sbr.rel (0) target = $region5
    $region4: #{forward.1} parent=1 // pred_region
      %s16 = ssub.s32 2048, 2048
      %17 = vsyncadd [#allocation5], %s16
      %s18 = sshll.u32 [#allocation4], 4
      %s19 = int_to_ptr.vmem [resolvable:$true] %s18
      %24 = dma.hbm_to_vmem [thread:$0]  %s0, 2048, %s19, [#allocation5], 128, 128, 8
    $region5: #{forward.1} parent=1 // pred_fallthru
      _
    // Predicated region
    $region6: #{forward.1} parent=1 // pred_check
      _
    $region7: #{forward.1} parent=1 // pred_check_branch
      %26 = sbr.rel (0) target = $region9
    $region8: #{forward.1} parent=1 // pred_region
      %s28 = ssub.s32 3072, 3072
      %29 = vsyncadd [#allocation8], %s28
      %s30 = sshll.u32 [#allocation7], 4
      %s31 = int_to_ptr.vmem [resolvable:$true] %s30
      %36 = dma.hbm_to_vmem [thread:$0]  %s1, 3072, %s31, [#allocation8], 128, 128, 8
    $region9: #{forward.1} parent=1 // pred_fallthru
      _
    // Predicated region
    $region10: #{forward.1} parent=1 // pred_check
      _
    $region11: #{forward.1} parent=1 // pred_check_branch
      %38 = sbr.rel (0) target = $region13
    $region12: #{forward.1} parent=1 // pred_region
      _
    $region13: #{forward.1} parent=1 // pred_fallthru
      _
    // Predicated region
    $region14: #{forward.1} parent=1 // pred_check
      _
    $region15: #{forward.1} parent=1 // pred_check_branch
      %40 = sbr.rel (0) target = $region17
    $region16: #{forward.1} parent=1 // pred_region
      %s42 = ssub.s32 32768, 32768
      %43 = vsyncadd [#allocation8], %s42
      %s44 = sshll.u32 [#allocation9], 4
      %s45 = int_to_ptr.vmem [resolvable:$true] %s44
      %50 = dma.hbm_to_vmem [thread:$0]  %s3, 32768, %s45, [#allocation8], 128, 128, 8
    $region17: #{forward.1} parent=1 // pred_fallthru
      _
    // Predicated region
    $region18: #{forward.1} parent=1 // pred_check
      _
    $region19: #{forward.1} parent=1 // pred_check_branch
      %52 = sbr.rel (0) target = $region21
    $region20: #{forward.1} parent=1 // pred_region
      _
    $region21: #{forward.1} parent=1 // pred_fallthru
      _
    // Predicated region
    $region22: #{forward.1} parent=1 // pred_check
      _
    $region23: #{forward.1} parent=1 // pred_check_branch
      %54 = sbr.rel (0) target = $region25
    $region24: #{forward.1} parent=1 // pred_region
      %55 = dma.done [#allocation5], 2048
    $region25: #{forward.1} parent=1 // pred_fallthru
      _
    // Predicated region
    $region26: #{forward.1} parent=1 // pred_check
      _
    $region27: #{forward.1} parent=1 // pred_check_branch
      %57 = sbr.rel (0) target = $region29
    $region28: #{forward.1} parent=1 // pred_region
      %58 = dma.done [#allocation8], 3072
    $region29: #{forward.1} parent=1 // pred_fallthru
      _
    // Predicated region
    $region30: #{forward.1} parent=1 // pred_check
      _
    $region31: #{forward.1} parent=1 // pred_check_branch
      %60 = sbr.rel (0) target = $region33
    $region32: #{forward.1} parent=1 // pred_region
      %61 = dma.done [#allocation8], 32768
    $region33: #{forward.1} parent=1 // pred_fallthru
      _
    %vm62 = vcmask 523264
    %63 = vst.msk [vmem:[#allocation2] sm:$0xff] %vm62, 0.0
    %64 = vst.msk [vmem:[#allocation2 + $0x8] sm:$0xff] %vm62, 0.0
    %vm65 = vcmask 517120
    %66 = vst.msk [vmem:[#allocation2 + $0x10] sm:$0x3] %vm65, 0.0
    %67 = vst.msk [vmem:[#allocation2 + $0x18] sm:$0xff] %vm62, 0.0
    %68 = vst.msk [vmem:[#allocation2 + $0x20] sm:$0xff] %vm62, 0.0
    %69 = vst.msk [vmem:[#allocation2 + $0x28] sm:$0x3] %vm65, 0.0
    %v70 = vld [vmem:[#allocation4] sm:$0xff]
    %v71 = vld [vmem:[#allocation4 + $0x8] sm:$0xff]
    %v72 = vld [vmem:[#allocation4 + $0x40] sm:$0xff]
    %v73 = vld [vmem:[#allocation4 + $0x48] sm:$0xff]
    %vm74 = vcmask 130048
    %75 = vst.msk [vmem:[#allocation2 + $0x1] sm:$0xff] %vm74, %v70
    %76 = vst.msk [vmem:[#allocation2 + $0x9] sm:$0xff] %vm74, %v71
    %77 = vst.msk [vmem:[#allocation2 + $0x19] sm:$0xff] %vm74, %v72
    %78 = vst.msk [vmem:[#allocation2 + $0x21] sm:$0xff] %vm74, %v73
    %s79 = scalar_lea.vmem [#allocation4], 16
    %v80 = vld [vmem:[%s79] sm:$0xff]
    %v81 = vld [vmem:[%s79 + $0x8] sm:$0xff]
    %v82 = vld [vmem:[%s79 + $0x40] sm:$0xff]
    %v83 = vld [vmem:[%s79 + $0x48] sm:$0xff]
    %88 = vrot.lane.b32.xlu0 %v80, 16
    %v89 = vpop.permute.xlu0 %88
    %90 = vrot.lane.b32.xlu0 %v81, 16
    %v91 = vpop.permute.xlu0 %90
    %92 = vrot.lane.b32.xlu0 %v82, 16
    %v93 = vpop.permute.xlu0 %92
    %94 = vrot.lane.b32.xlu0 %v83, 16
    %v95 = vpop.permute.xlu0 %94
    %vm100 = vcmask 261248
    %101 = vst.msk [vmem:[#allocation2 + $0x1] sm:$0xff] %vm100, %v89
    %102 = vst.msk [vmem:[#allocation2 + $0x9] sm:$0xff] %vm100, %v91
    %103 = vst.msk [vmem:[#allocation2 + $0x19] sm:$0xff] %vm100, %v93
    %104 = vst.msk [vmem:[#allocation2 + $0x21] sm:$0xff] %vm100, %v95
    %s105 = scalar_lea.vmem [#allocation4], 32
    %v106 = vld [vmem:[%s105] sm:$0xff]
    %v107 = vld [vmem:[%s105 + $0x8] sm:$0xff]
    %v108 = vld [vmem:[%s105 + $0x40] sm:$0xff]
    %v109 = vld [vmem:[%s105 + $0x48] sm:$0xff]
    %114 = vrot.lane.b32.xlu0 %v106, 32
    %v115 = vpop.permute.xlu0 %114
    %116 = vrot.lane.b32.xlu0 %v107, 32
    %v117 = vpop.permute.xlu0 %116
    %118 = vrot.lane.b32.xlu0 %v108, 32
    %v119 = vpop.permute.xlu0 %118
    %120 = vrot.lane.b32.xlu0 %v109, 32
    %v121 = vpop.permute.xlu0 %120
    %vm126 = vcmask 392448
    %127 = vst.msk [vmem:[#allocation2 + $0x1] sm:$0xff] %vm126, %v115
    %128 = vst.msk [vmem:[#allocation2 + $0x9] sm:$0xff] %vm126, %v117
    %129 = vst.msk [vmem:[#allocation2 + $0x19] sm:$0xff] %vm126, %v119
    %130 = vst.msk [vmem:[#allocation2 + $0x21] sm:$0xff] %vm126, %v121
    %s131 = scalar_lea.vmem [#allocation4], 48
    %v132 = vld [vmem:[%s131] sm:$0xff]
    %v133 = vld [vmem:[%s131 + $0x8] sm:$0xff]
    %v134 = vld [vmem:[%s131 + $0x40] sm:$0xff]
    %v135 = vld [vmem:[%s131 + $0x48] sm:$0xff]
    %140 = vrot.lane.b32.xlu0 %v132, 48
    %v141 = vpop.permute.xlu0 %140
    %142 = vrot.lane.b32.xlu0 %v133, 48
    %v143 = vpop.permute.xlu0 %142
    %144 = vrot.lane.b32.xlu0 %v134, 48
    %v145 = vpop.permute.xlu0 %144
    %146 = vrot.lane.b32.xlu0 %v135, 48
    %v147 = vpop.permute.xlu0 %146
    %vm152 = vcmask 523648
    %153 = vst.msk [vmem:[#allocation2 + $0x1] sm:$0xff] %vm152, %v141
    %154 = vst.msk [vmem:[#allocation2 + $0x9] sm:$0xff] %vm152, %v143
    %155 = vst.msk [vmem:[#allocation2 + $0x19] sm:$0xff] %vm152, %v145
    %156 = vst.msk [vmem:[#allocation2 + $0x21] sm:$0xff] %vm152, %v147
    %v157 = vld [vmem:[#allocation2] sm:$0xff]
    %v158 = vld [vmem:[#allocation2 + $0x8] sm:$0xff]
    %v159 = vld [vmem:[#allocation2 + $0x18] sm:$0xff]
    %v160 = vld [vmem:[#allocation2 + $0x20] sm:$0xff]
    %v161 = vld [vmem:[#allocation7] sm:$0xff]
    %v162 = vld [vmem:[#allocation7 + $0x8] sm:$0xff]
    %v163 = vld [vmem:[#allocation7 + $0x10] sm:$0xff]
    %v164 = vld [vmem:[#allocation7 + $0x18] sm:$0xff]
    %v165 = vld [vmem:[#allocation7 + $0x20] sm:$0xff]
    %v166 = vld [vmem:[#allocation7 + $0x28] sm:$0xff]
    %v167 = vld [vmem:[#allocation7 + $0x30] sm:$0xff]
    %v168 = vld [vmem:[#allocation7 + $0x38] sm:$0xff]
    %v169 = vld [vmem:[#allocation2 + $0x1] sm:$0xff]
    %v170 = vld [vmem:[#allocation2 + $0x9] sm:$0xff]
    %v171 = vld [vmem:[#allocation2 + $0x19] sm:$0xff]
    %v172 = vld [vmem:[#allocation2 + $0x21] sm:$0xff]
    %s173 = scalar_lea.vmem [#allocation7], 64
    %v174 = vld [vmem:[%s173] sm:$0xff]
    %v175 = vld [vmem:[%s173 + $0x8] sm:$0xff]
    %v176 = vld [vmem:[%s173 + $0x10] sm:$0xff]
    %v177 = vld [vmem:[%s173 + $0x18] sm:$0xff]
    %v178 = vld [vmem:[%s173 + $0x20] sm:$0xff]
    %v179 = vld [vmem:[%s173 + $0x28] sm:$0xff]
    %v180 = vld [vmem:[%s173 + $0x30] sm:$0xff]
    %v181 = vld [vmem:[%s173 + $0x38] sm:$0xff]
    %v183 = vsel %vm62, %v169, 0
    %v186 = vsel %vm62, %v170, 0
    %v189 = vsel %vm62, %v171, 0
    %v192 = vsel %vm62, %v172, 0
    %194 = vmatprep.subr.mxu0 0.0
    %195 = vmatpush1.msra.mxu0 %v174
    %196 = vmatprep.subr.mxu0 0.0
    %197 = vmatpush1.msra.mxu0 %v175
    %198 = vmatprep.subr.mxu0 0.0
    %199 = vmatpush1.msra.mxu0 %v176
    %200 = vmatprep.subr.mxu0 0.0
    %201 = vmatpush1.msra.mxu0 %v177
    %202 = vmatprep.subr.mxu0 0.0
    %203 = vmatpush1.msra.mxu0 %v178
    %204 = vmatprep.subr.mxu0 0.0
    %205 = vmatpush1.msra.mxu0 %v179
    %206 = vmatprep.subr.mxu0 0.0
    %207 = vmatpush1.msra.mxu0 %v180
    %208 = vmatprep.subr.mxu0 0.0
    %209 = vmatpush1.msra.mxu0 %v181
    %210 = vmatprep.subr.mxu0 0.0
    %211 = vmatpush1.msra.mxu0 0.0
    %212 = vmatprep.subr.mxu0 0.0
    %213 = vmatpush1.msra.mxu0 0.0
    %214 = vmatprep.subr.mxu0 0.0
    %215 = vmatpush1.msra.mxu0 0.0
    %216 = vmatprep.subr.mxu0 0.0
    %217 = vmatpush1.msra.mxu0 0.0
    %218 = vmatprep.subr.mxu0 0.0
    %219 = vmatpush1.msra.mxu0 0.0
    %220 = vmatprep.subr.mxu0 0.0
    %221 = vmatpush1.msra.mxu0 0.0
    %222 = vmatprep.subr.mxu0 0.0
    %223 = vmatpush1.msra.mxu0 0.0
    %224 = vmatprep.subr.mxu0 0.0
    %225 = vmatpush1.msra.mxu0 0.0
    %226 = vmatprep.subr.mxu0 0.0
    %227 = vmatpush1.msra.mxu0 0.0
    %228 = vmatprep.subr.mxu0 0.0
    %229 = vmatpush1.msra.mxu0 0.0
    %230 = vmatprep.subr.mxu0 0.0
    %231 = vmatpush1.msra.mxu0 0.0
    %232 = vmatprep.subr.mxu0 0.0
    %233 = vmatpush1.msra.mxu0 0.0
    %234 = vmatprep.subr.mxu0 0.0
    %235 = vmatpush1.msra.mxu0 0.0
    %236 = vmatprep.subr.mxu0 0.0
    %237 = vmatpush1.msra.mxu0 0.0
    %238 = vmatprep.subr.mxu0 0.0
    %239 = vmatpush1.msra.mxu0 0.0
    %240 = vmatprep.subr.mxu0 0.0
    %241 = vmatpush1.msra.mxu0 0.0
    %242 = vmatprep.subr.mxu0 0.0
    %243 = vmatpush1.msra.mxu0 0.0
    %244 = vmatprep.subr.mxu0 0.0
    %245 = vmatpush1.msra.mxu0 0.0
    %246 = vmatprep.subr.mxu0 0.0
    %247 = vmatpush1.msra.mxu0 0.0
    %248 = vmatprep.subr.mxu0 0.0
    %249 = vmatpush1.msra.mxu0 0.0
    %250 = vmatprep.subr.mxu0 0.0
    %251 = vmatpush1.msra.mxu0 0.0
    %252 = vmatprep.subr.mxu0 0.0
    %253 = vmatpush1.msra.mxu0 0.0
    %254 = vmatprep.subr.mxu0 0.0
    %255 = vmatpush1.msra.mxu0 0.0
    %256 = vmatprep.subr.mxu0 0.0
    %257 = vmatpush1.msra.mxu0 0.0
    %258 = vmatprep.mubr.f32.mxu0 0.0
    %259 = vmatmul.mubr.f32.gmra.mrb[0].mxu0 %v183
    %v260 = vpop.f32.mrb[0].mxu0
    %v261 = vadd.f32 0.0, %v260
    %v262 = vpop.f32.mrb[0].mxu0
    %263 = vmatprep.mubr.f32.mxu0 0.0
    %264 = vmatmul.mubr.f32.gmra.mrb[0].mxu0 %v186
    %v265 = vpop.f32.mrb[0].mxu0
    %v266 = vadd.f32 0.0, %v265
    %v267 = vpop.f32.mrb[0].mxu0
    %268 = vmatprep.mubr.f32.mxu0 0.0
    %269 = vmatmul.mubr.f32.gmra.mrb[0].mxu0 %v189
    %v270 = vpop.f32.mrb[0].mxu0
    %v271 = vadd.f32 0.0, %v270
    %v272 = vpop.f32.mrb[0].mxu0
    %273 = vmatprep.mubr.f32.mxu0 0.0
    %274 = vmatmul.mubr.f32.gmra.mrb[0].mxu0 %v192
    %v275 = vpop.f32.mrb[0].mxu0
    %v276 = vadd.f32 0.0, %v275
    %v277 = vpop.f32.mrb[0].mxu0
    %278 = vdwg.mxu0
    %v280 = vsel %vm62, %v157, 0
    %v283 = vsel %vm62, %v158, 0
    %v286 = vsel %vm62, %v159, 0
    %v289 = vsel %vm62, %v160, 0
    %291 = vmatprep.subr.mxu0 0.0
    %292 = vmatpush1.msra.mxu0 %v161
    %293 = vmatprep.subr.mxu0 0.0
    %294 = vmatpush1.msra.mxu0 %v162
    %295 = vmatprep.subr.mxu0 0.0
    %296 = vmatpush1.msra.mxu0 %v163
    %297 = vmatprep.subr.mxu0 0.0
    %298 = vmatpush1.msra.mxu0 %v164
    %299 = vmatprep.subr.mxu0 0.0
    %300 = vmatpush1.msra.mxu0 %v165
    %301 = vmatprep.subr.mxu0 0.0
    %302 = vmatpush1.msra.mxu0 %v166
    %303 = vmatprep.subr.mxu0 0.0
    %304 = vmatpush1.msra.mxu0 %v167
    %305 = vmatprep.subr.mxu0 0.0
    %306 = vmatpush1.msra.mxu0 %v168
    %307 = vmatprep.subr.mxu0 0.0
    %308 = vmatpush1.msra.mxu0 0.0
    %309 = vmatprep.subr.mxu0 0.0
    %310 = vmatpush1.msra.mxu0 0.0
    %311 = vmatprep.subr.mxu0 0.0
    %312 = vmatpush1.msra.mxu0 0.0
    %313 = vmatprep.subr.mxu0 0.0
    %314 = vmatpush1.msra.mxu0 0.0
    %315 = vmatprep.subr.mxu0 0.0
    %316 = vmatpush1.msra.mxu0 0.0
    %317 = vmatprep.subr.mxu0 0.0
    %318 = vmatpush1.msra.mxu0 0.0
    %319 = vmatprep.subr.mxu0 0.0
    %320 = vmatpush1.msra.mxu0 0.0
    %321 = vmatprep.subr.mxu0 0.0
    %322 = vmatpush1.msra.mxu0 0.0
    %323 = vmatprep.subr.mxu0 0.0
    %324 = vmatpush1.msra.mxu0 0.0
    %325 = vmatprep.subr.mxu0 0.0
    %326 = vmatpush1.msra.mxu0 0.0
    %327 = vmatprep.subr.mxu0 0.0
    %328 = vmatpush1.msra.mxu0 0.0
    %329 = vmatprep.subr.mxu0 0.0
    %330 = vmatpush1.msra.mxu0 0.0
    %331 = vmatprep.subr.mxu0 0.0
    %332 = vmatpush1.msra.mxu0 0.0
    %333 = vmatprep.subr.mxu0 0.0
    %334 = vmatpush1.msra.mxu0 0.0
    %335 = vmatprep.subr.mxu0 0.0
    %336 = vmatpush1.msra.mxu0 0.0
    %337 = vmatprep.subr.mxu0 0.0
    %338 = vmatpush1.msra.mxu0 0.0
    %339 = vmatprep.subr.mxu0 0.0
    %340 = vmatpush1.msra.mxu0 0.0
    %341 = vmatprep.subr.mxu0 0.0
    %342 = vmatpush1.msra.mxu0 0.0
    %343 = vmatprep.subr.mxu0 0.0
    %344 = vmatpush1.msra.mxu0 0.0
    %345 = vmatprep.subr.mxu0 0.0
    %346 = vmatpush1.msra.mxu0 0.0
    %347 = vmatprep.subr.mxu0 0.0
    %348 = vmatpush1.msra.mxu0 0.0
    %349 = vmatprep.subr.mxu0 0.0
    %350 = vmatpush1.msra.mxu0 0.0
    %351 = vmatprep.subr.mxu0 0.0
    %352 = vmatpush1.msra.mxu0 0.0
    %353 = vmatprep.subr.mxu0 0.0
    %354 = vmatpush1.msra.mxu0 0.0
    %355 = vmatprep.mubr.f32.mxu0 0.0
    %356 = vmatmul.mubr.f32.gmra.mrb[0].mxu0 %v280
    %v357 = vpop.f32.mrb[0].mxu0
    %v358 = vadd.f32 %v261, %v357
    %v359 = vpop.f32.mrb[0].mxu0
    %360 = vmatprep.mubr.f32.mxu0 0.0
    %361 = vmatmul.mubr.f32.gmra.mrb[0].mxu0 %v283
    %v362 = vpop.f32.mrb[0].mxu0
    %v363 = vadd.f32 %v266, %v362
    %v364 = vpop.f32.mrb[0].mxu0
    %365 = vmatprep.mubr.f32.mxu0 0.0
    %366 = vmatmul.mubr.f32.gmra.mrb[0].mxu0 %v286
    %v367 = vpop.f32.mrb[0].mxu0
    %v368 = vadd.f32 %v271, %v367
    %v369 = vpop.f32.mrb[0].mxu0
    %370 = vmatprep.mubr.f32.mxu0 0.0
    %371 = vmatmul.mubr.f32.gmra.mrb[0].mxu0 %v289
    %v372 = vpop.f32.mrb[0].mxu0
    %v373 = vadd.f32 %v276, %v372
    %v374 = vpop.f32.mrb[0].mxu0
    %375 = vdwg.mxu0
    %v376 = vld [vmem:[#allocation2 + $0x2] sm:$0xff]
    %v377 = vld [vmem:[#allocation2 + $0xa] sm:$0xff]
    %v378 = vld [vmem:[#allocation2 + $0x1a] sm:$0xff]
    %v379 = vld [vmem:[#allocation2 + $0x22] sm:$0xff]
    %s380 = scalar_lea.vmem [#allocation7], 128
    %v381 = vld [vmem:[%s380] sm:$0xff]
    %v382 = vld [vmem:[%s380 + $0x8] sm:$0xff]
    %v383 = vld [vmem:[%s380 + $0x10] sm:$0xff]
    %v384 = vld [vmem:[%s380 + $0x18] sm:$0xff]
    %v385 = vld [vmem:[%s380 + $0x20] sm:$0xff]
    %v386 = vld [vmem:[%s380 + $0x28] sm:$0xff]
    %v387 = vld [vmem:[%s380 + $0x30] sm:$0xff]
    %v388 = vld [vmem:[%s380 + $0x38] sm:$0xff]
    %v390 = vsel %vm62, %v376, 0
    %v393 = vsel %vm62, %v377, 0
    %v396 = vsel %vm62, %v378, 0
    %v399 = vsel %vm62, %v379, 0
    %401 = vmatprep.subr.mxu0 0.0
    %402 = vmatpush1.msra.mxu0 %v381
    %403 = vmatprep.subr.mxu0 0.0
    %404 = vmatpush1.msra.mxu0 %v382
    %405 = vmatprep.subr.mxu0 0.0
    %406 = vmatpush1.msra.mxu0 %v383
    %407 = vmatprep.subr.mxu0 0.0
    %408 = vmatpush1.msra.mxu0 %v384
    %409 = vmatprep.subr.mxu0 0.0
    %410 = vmatpush1.msra.mxu0 %v385
    %411 = vmatprep.subr.mxu0 0.0
    %412 = vmatpush1.msra.mxu0 %v386
    %413 = vmatprep.subr.mxu0 0.0
    %414 = vmatpush1.msra.mxu0 %v387
    %415 = vmatprep.subr.mxu0 0.0
    %416 = vmatpush1.msra.mxu0 %v388
    %417 = vmatprep.subr.mxu0 0.0
    %418 = vmatpush1.msra.mxu0 0.0
    %419 = vmatprep.subr.mxu0 0.0
    %420 = vmatpush1.msra.mxu0 0.0
    %421 = vmatprep.subr.mxu0 0.0
    %422 = vmatpush1.msra.mxu0 0.0
    %423 = vmatprep.subr.mxu0 0.0
    %424 = vmatpush1.msra.mxu0 0.0
    %425 = vmatprep.subr.mxu0 0.0
    %426 = vmatpush1.msra.mxu0 0.0
    %427 = vmatprep.subr.mxu0 0.0
    %428 = vmatpush1.msra.mxu0 0.0
    %429 = vmatprep.subr.mxu0 0.0
    %430 = vmatpush1.msra.mxu0 0.0
    %431 = vmatprep.subr.mxu0 0.0
    %432 = vmatpush1.msra.mxu0 0.0
    %433 = vmatprep.subr.mxu0 0.0
    %434 = vmatpush1.msra.mxu0 0.0
    %435 = vmatprep.subr.mxu0 0.0
    %436 = vmatpush1.msra.mxu0 0.0
    %437 = vmatprep.subr.mxu0 0.0
    %438 = vmatpush1.msra.mxu0 0.0
    %439 = vmatprep.subr.mxu0 0.0
    %440 = vmatpush1.msra.mxu0 0.0
    %441 = vmatprep.subr.mxu0 0.0
    %442 = vmatpush1.msra.mxu0 0.0
    %443 = vmatprep.subr.mxu0 0.0
    %444 = vmatpush1.msra.mxu0 0.0
    %445 = vmatprep.subr.mxu0 0.0
    %446 = vmatpush1.msra.mxu0 0.0
    %447 = vmatprep.subr.mxu0 0.0
    %448 = vmatpush1.msra.mxu0 0.0
    %449 = vmatprep.subr.mxu0 0.0
    %450 = vmatpush1.msra.mxu0 0.0
    %451 = vmatprep.subr.mxu0 0.0
    %452 = vmatpush1.msra.mxu0 0.0
    %453 = vmatprep.subr.mxu0 0.0
    %454 = vmatpush1.msra.mxu0 0.0
    %455 = vmatprep.subr.mxu0 0.0
    %456 = vmatpush1.msra.mxu0 0.0
    %457 = vmatprep.subr.mxu0 0.0
    %458 = vmatpush1.msra.mxu0 0.0
    %459 = vmatprep.subr.mxu0 0.0
    %460 = vmatpush1.msra.mxu0 0.0
    %461 = vmatprep.subr.mxu0 0.0
    %462 = vmatpush1.msra.mxu0 0.0
    %463 = vmatprep.subr.mxu0 0.0
    %464 = vmatpush1.msra.mxu0 0.0
    %465 = vmatprep.mubr.f32.mxu0 0.0
    %466 = vmatmul.mubr.f32.gmra.mrb[0].mxu0 %v390
    %v467 = vpop.f32.mrb[0].mxu0
    %v468 = vadd.f32 0.0, %v467
    %v469 = vpop.f32.mrb[0].mxu0
    %470 = vmatprep.mubr.f32.mxu0 0.0
    %471 = vmatmul.mubr.f32.gmra.mrb[0].mxu0 %v393
    %v472 = vpop.f32.mrb[0].mxu0
    %v473 = vadd.f32 0.0, %v472
    %v474 = vpop.f32.mrb[0].mxu0
    %475 = vmatprep.mubr.f32.mxu0 0.0
    %476 = vmatmul.mubr.f32.gmra.mrb[0].mxu0 %v396
    %v477 = vpop.f32.mrb[0].mxu0
    %v478 = vadd.f32 0.0, %v477
    %v479 = vpop.f32.mrb[0].mxu0
    %480 = vmatprep.mubr.f32.mxu0 0.0
    %481 = vmatmul.mubr.f32.gmra.mrb[0].mxu0 %v399
    %v482 = vpop.f32.mrb[0].mxu0
    %v483 = vadd.f32 0.0, %v482
    %v484 = vpop.f32.mrb[0].mxu0
    %485 = vdwg.mxu0
    %v486 = vadd.f32 %v358, %v468
    %v487 = vadd.f32 %v363, %v473
    %v488 = vadd.f32 %v368, %v478
    %v489 = vadd.f32 %v373, %v483
    %v490 = vld [vmem:[%s2] sm:$0x1]
    %v492 = vlaneseq
    %v493 = vshrl.u32 %v492, 7
    %v494 = vsub.s32 0, %v493
    %v495 = vrot.slane %v490, %v494
    %v497 = vadd.f32 %v486, %v495
    %v498 = vadd.f32 %v487, %v495
    %v499 = vadd.f32 %v488, %v495
    %v500 = vadd.f32 %v489, %v495
    %v501 = vmax.f32 %v497, 0.0
    %v502 = vmax.f32 %v498, 0.0
    %v503 = vmax.f32 %v499, 0.0
    %v504 = vmax.f32 %v500, 0.0
    %v508 = vunpack.c.l.s4 1983009808
    %v509 = vunpack.c.0.s8 %v508
    %v510 = vlaneseq
    %v511 = vshrl.u32 %v510, 7
    %v512 = vsub.s32 %v509, %v511
    %v513 = vrot.slane %v501, %v512
    %v515 = vunpack.c.l.s4 1983009808
    %v516 = vunpack.c.0.s8 %v515
    %v517 = vlaneseq
    %v518 = vshrl.u32 %v517, 7
    %v519 = vsub.s32 %v516, %v518
    %v520 = vrot.slane %v503, %v519
    %vm521 = vcmask 1044484
    %v522 = vsel %vm521, %v513, %v513
    %vm523 = vcmask 1046534
    %v524 = vsel %vm523, %v513, %v522
    %v525 = vrot.slane %v520, 7
    %vm526 = vcmask 1041409
    %v527 = vsel %vm526, %v525, %v524
    %vm528 = vcmask 1043459
    %v529 = vsel %vm528, %v525, %v527
    %vm530 = vcmask 1045509
    %v531 = vsel %vm530, %v525, %v529
    %vm532 = vcmask 1047559
    %v533 = vsel %vm532, %v525, %v531
    %535 = vst [vmem:[#allocation3] sm:$0x3] %v533
    %v536 = vrot.slane %v513, 1
    %v537 = vsel %vm521, %v536, %v536
    %v538 = vsel %vm523, %v536, %v537
    %v539 = vsel %vm526, %v520, %v538
    %v540 = vsel %vm528, %v520, %v539
    %v541 = vsel %vm530, %v520, %v540
    %v542 = vsel %vm532, %v520, %v541
    %544 = vst [vmem:[#allocation3 + $0x2] sm:$0x3] %v542
    %v545 = vcombine.high %v513, %v513
    %v546 = vcombine.high %v520, %v520
    %v547 = vsel %vm521, %v545, %v545
    %v548 = vsel %vm523, %v545, %v547
    %v549 = vrot.slane %v546, 7
    %v550 = vsel %vm526, %v549, %v548
    %v551 = vsel %vm528, %v549, %v550
    %v552 = vsel %vm530, %v549, %v551
    %v553 = vsel %vm532, %v549, %v552
    %555 = vst [vmem:[#allocation3 + $0x4] sm:$0x3] %v553
    %v556 = vrot.slane %v545, 1
    %v557 = vsel %vm521, %v556, %v556
    %v558 = vsel %vm523, %v556, %v557
    %v559 = vsel %vm526, %v546, %v558
    %v560 = vsel %vm528, %v546, %v559
    %v561 = vsel %vm530, %v546, %v560
    %v562 = vsel %vm532, %v546, %v561
    %564 = vst [vmem:[#allocation3 + $0x6] sm:$0x3] %v562
    %v565 = vcombine.high %v501, %v501
    %v567 = vunpack.c.l.s4 1983009808
    %v568 = vunpack.c.0.s8 %v567
    %v569 = vlaneseq
    %v570 = vshrl.u32 %v569, 7
    %v571 = vsub.s32 %v568, %v570
    %v572 = vrot.slane %v565, %v571
    %v573 = vcombine.high %v503, %v503
    %v575 = vunpack.c.l.s4 1983009808
    %v576 = vunpack.c.0.s8 %v575
    %v577 = vlaneseq
    %v578 = vshrl.u32 %v577, 7
    %v579 = vsub.s32 %v576, %v578
    %v580 = vrot.slane %v573, %v579
    %v581 = vsel %vm521, %v572, %v572
    %v582 = vsel %vm523, %v572, %v581
    %v583 = vrot.slane %v580, 7
    %v584 = vsel %vm526, %v583, %v582
    %v585 = vsel %vm528, %v583, %v584
    %v586 = vsel %vm530, %v583, %v585
    %v587 = vsel %vm532, %v583, %v586
    %589 = vst [vmem:[#allocation3 + $0x8] sm:$0x3] %v587
    %v590 = vrot.slane %v572, 1
    %v591 = vsel %vm521, %v590, %v590
    %v592 = vsel %vm523, %v590, %v591
    %v593 = vsel %vm526, %v580, %v592
    %v594 = vsel %vm528, %v580, %v593
    %v595 = vsel %vm530, %v580, %v594
    %v596 = vsel %vm532, %v580, %v595
    %598 = vst [vmem:[#allocation3 + $0xa] sm:$0x3] %v596
    %v599 = vcombine.high %v572, %v572
    %v600 = vcombine.high %v580, %v580
    %v601 = vsel %vm521, %v599, %v599
    %v602 = vsel %vm523, %v599, %v601
    %v603 = vrot.slane %v600, 7
    %v604 = vsel %vm526, %v603, %v602
    %v605 = vsel %vm528, %v603, %v604
    %v606 = vsel %vm530, %v603, %v605
    %v607 = vsel %vm532, %v603, %v606
    %609 = vst [vmem:[#allocation3 + $0xc] sm:$0x3] %v607
    %v610 = vrot.slane %v599, 1
    %v611 = vsel %vm521, %v610, %v610
    %v612 = vsel %vm523, %v610, %v611
    %v613 = vsel %vm526, %v600, %v612
    %v614 = vsel %vm528, %v600, %v613
    %v615 = vsel %vm530, %v600, %v614
    %v616 = vsel %vm532, %v600, %v615
    %618 = vst [vmem:[#allocation3 + $0xe] sm:$0x3] %v616
    %v622 = vunpack.c.l.s4 1983009808
    %v623 = vunpack.c.0.s8 %v622
    %v624 = vlaneseq
    %v625 = vshrl.u32 %v624, 7
    %v626 = vsub.s32 %v623, %v625
    %v627 = vrot.slane %v502, %v626
    %v629 = vunpack.c.l.s4 1983009808
    %v630 = vunpack.c.0.s8 %v629
    %v631 = vlaneseq
    %v632 = vshrl.u32 %v631, 7
    %v633 = vsub.s32 %v630, %v632
    %v634 = vrot.slane %v504, %v633
    %v635 = vsel %vm521, %v627, %v627
    %v636 = vsel %vm523, %v627, %v635
    %v637 = vrot.slane %v634, 7
    %v638 = vsel %vm526, %v637, %v636
    %v639 = vsel %vm528, %v637, %v638
    %v640 = vsel %vm530, %v637, %v639
    %v641 = vsel %vm532, %v637, %v640
    %643 = vst [vmem:[#allocation3 + $0x10] sm:$0x3] %v641
    %v644 = vrot.slane %v627, 1
    %v645 = vsel %vm521, %v644, %v644
    %v646 = vsel %vm523, %v644, %v645
    %v647 = vsel %vm526, %v634, %v646
    %v648 = vsel %vm528, %v634, %v647
    %v649 = vsel %vm530, %v634, %v648
    %v650 = vsel %vm532, %v634, %v649
    %652 = vst [vmem:[#allocation3 + $0x12] sm:$0x3] %v650
    %v653 = vcombine.high %v627, %v627
    %v654 = vcombine.high %v634, %v634
    %v655 = vsel %vm521, %v653, %v653
    %v656 = vsel %vm523, %v653, %v655
    %v657 = vrot.slane %v654, 7
    %v658 = vsel %vm526, %v657, %v656
    %v659 = vsel %vm528, %v657, %v658
    %v660 = vsel %vm530, %v657, %v659
    %v661 = vsel %vm532, %v657, %v660
    %663 = vst [vmem:[#allocation3 + $0x14] sm:$0x3] %v661
    %v664 = vrot.slane %v653, 1
    %v665 = vsel %vm521, %v664, %v664
    %v666 = vsel %vm523, %v664, %v665
    %v667 = vsel %vm526, %v654, %v666
    %v668 = vsel %vm528, %v654, %v667
    %v669 = vsel %vm530, %v654, %v668
    %v670 = vsel %vm532, %v654, %v669
    %672 = vst [vmem:[#allocation3 + $0x16] sm:$0x3] %v670
    %v673 = vcombine.high %v502, %v502
    %v675 = vunpack.c.l.s4 1983009808
    %v676 = vunpack.c.0.s8 %v675
    %v677 = vlaneseq
    %v678 = vshrl.u32 %v677, 7
    %v679 = vsub.s32 %v676, %v678
    %v680 = vrot.slane %v673, %v679
    %v681 = vcombine.high %v504, %v504
    %v683 = vunpack.c.l.s4 1983009808
    %v684 = vunpack.c.0.s8 %v683
    %v685 = vlaneseq
    %v686 = vshrl.u32 %v685, 7
    %v687 = vsub.s32 %v684, %v686
    %v688 = vrot.slane %v681, %v687
    %v689 = vsel %vm521, %v680, %v680
    %v690 = vsel %vm523, %v680, %v689
    %v691 = vrot.slane %v688, 7
    %v692 = vsel %vm526, %v691, %v690
    %v693 = vsel %vm528, %v691, %v692
    %v694 = vsel %vm530, %v691, %v693
    %v695 = vsel %vm532, %v691, %v694
    %697 = vst [vmem:[#allocation3 + $0x18] sm:$0x3] %v695
    %v698 = vrot.slane %v680, 1
    %v699 = vsel %vm521, %v698, %v698
    %v700 = vsel %vm523, %v698, %v699
    %v701 = vsel %vm526, %v688, %v700
    %v702 = vsel %vm528, %v688, %v701
    %v703 = vsel %vm530, %v688, %v702
    %v704 = vsel %vm532, %v688, %v703
    %706 = vst [vmem:[#allocation3 + $0x1a] sm:$0x3] %v704
    %v707 = vcombine.high %v680, %v680
    %v708 = vcombine.high %v688, %v688
    %v709 = vsel %vm521, %v707, %v707
    %v710 = vsel %vm523, %v707, %v709
    %v711 = vrot.slane %v708, 7
    %v712 = vsel %vm526, %v711, %v710
    %v713 = vsel %vm528, %v711, %v712
    %v714 = vsel %vm530, %v711, %v713
    %v715 = vsel %vm532, %v711, %v714
    %717 = vst [vmem:[#allocation3 + $0x1c] sm:$0x3] %v715
    %v718 = vrot.slane %v707, 1
    %v719 = vsel %vm521, %v718, %v718
    %v720 = vsel %vm523, %v718, %v719
    %v721 = vsel %vm526, %v708, %v720
    %v722 = vsel %vm528, %v708, %v721
    %v723 = vsel %vm530, %v708, %v722
    %v724 = vsel %vm532, %v708, %v723
    %726 = vst [vmem:[#allocation3 + $0x1e] sm:$0x3] %v724
    %v727 = vld [vmem:[#allocation3] sm:$0xff]
    %v728 = vld [vmem:[#allocation3 + $0x8] sm:$0xff]
    %v729 = vld [vmem:[#allocation3 + $0x10] sm:$0xff]
    %v730 = vld [vmem:[#allocation3 + $0x18] sm:$0xff]
    %v731 = vld [vmem:[#allocation9] sm:$0xff]
    %v732 = vld [vmem:[#allocation9 + $0x8] sm:$0xff]
    %v733 = vld [vmem:[#allocation9 + $0x10] sm:$0xff]
    %v734 = vld [vmem:[#allocation9 + $0x18] sm:$0xff]
    %v735 = vld [vmem:[#allocation9 + $0x20] sm:$0xff]
    %v736 = vld [vmem:[#allocation9 + $0x28] sm:$0xff]
    %v737 = vld [vmem:[#allocation9 + $0x30] sm:$0xff]
    %v738 = vld [vmem:[#allocation9 + $0x38] sm:$0xff]
    %v739 = vld [vmem:[#allocation9 + $0x40] sm:$0xff]
    %v740 = vld [vmem:[#allocation9 + $0x48] sm:$0xff]
    %v741 = vld [vmem:[#allocation9 + $0x50] sm:$0xff]
    %v742 = vld [vmem:[#allocation9 + $0x58] sm:$0xff]
    %v743 = vld [vmem:[#allocation9 + $0x60] sm:$0xff]
    %v744 = vld [vmem:[#allocation9 + $0x68] sm:$0xff]
    %v745 = vld [vmem:[#allocation9 + $0x70] sm:$0xff]
    %v746 = vld [vmem:[#allocation9 + $0x78] sm:$0xff]
    %v747 = vld [vmem:[#allocation9 + $0x80] sm:$0xff]
    %v748 = vld [vmem:[#allocation9 + $0x88] sm:$0xff]
    %v749 = vld [vmem:[#allocation9 + $0x90] sm:$0xff]
    %v750 = vld [vmem:[#allocation9 + $0x98] sm:$0xff]
    %v751 = vld [vmem:[#allocation9 + $0xa0] sm:$0xff]
    %v752 = vld [vmem:[#allocation9 + $0xa8] sm:$0xff]
    %v753 = vld [vmem:[#allocation9 + $0xb0] sm:$0xff]
    %v754 = vld [vmem:[#allocation9 + $0xb8] sm:$0xff]
    %v755 = vld [vmem:[#allocation9 + $0xc0] sm:$0xff]
    %v756 = vld [vmem:[#allocation9 + $0xc8] sm:$0xff]
    %v757 = vld [vmem:[#allocation9 + $0xd0] sm:$0xff]
    %v758 = vld [vmem:[#allocation9 + $0xd8] sm:$0xff]
    %v759 = vld [vmem:[#allocation9 + $0xe0] sm:$0xff]
    %v760 = vld [vmem:[#allocation9 + $0xe8] sm:$0xff]
    %v761 = vld [vmem:[#allocation9 + $0xf0] sm:$0xff]
    %v762 = vld [vmem:[#allocation9 + $0xf8] sm:$0xff]
    %v763 = vld [vmem:[#allocation9 + $0x100] sm:$0xff]
    %v764 = vld [vmem:[#allocation9 + $0x108] sm:$0xff]
    %v765 = vld [vmem:[#allocation9 + $0x110] sm:$0xff]
    %v766 = vld [vmem:[#allocation9 + $0x118] sm:$0xff]
    %v767 = vld [vmem:[#allocation9 + $0x120] sm:$0xff]
    %v768 = vld [vmem:[#allocation9 + $0x128] sm:$0xff]
    %v769 = vld [vmem:[#allocation9 + $0x130] sm:$0xff]
    %v770 = vld [vmem:[#allocation9 + $0x138] sm:$0xff]
    %v771 = vld [vmem:[#allocation9 + $0x140] sm:$0xff]
    %v772 = vld [vmem:[#allocation9 + $0x148] sm:$0xff]
    %v773 = vld [vmem:[#allocation9 + $0x150] sm:$0xff]
    %v774 = vld [vmem:[#allocation9 + $0x158] sm:$0xff]
    %v775 = vld [vmem:[#allocation9 + $0x160] sm:$0xff]
    %v776 = vld [vmem:[#allocation9 + $0x168] sm:$0xff]
    %v777 = vld [vmem:[#allocation9 + $0x170] sm:$0xff]
    %v778 = vld [vmem:[#allocation9 + $0x178] sm:$0xff]
    %v779 = vld [vmem:[#allocation9 + $0x180] sm:$0xff]
    %v780 = vld [vmem:[#allocation9 + $0x188] sm:$0xff]
    %v781 = vld [vmem:[#allocation9 + $0x190] sm:$0xff]
    %v782 = vld [vmem:[#allocation9 + $0x198] sm:$0xff]
    %v783 = vld [vmem:[#allocation9 + $0x1a0] sm:$0xff]
    %v784 = vld [vmem:[#allocation9 + $0x1a8] sm:$0xff]
    %v785 = vld [vmem:[#allocation9 + $0x1b0] sm:$0xff]
    %v786 = vld [vmem:[#allocation9 + $0x1b8] sm:$0xff]
    %v787 = vld [vmem:[#allocation9 + $0x1c0] sm:$0xff]
    %v788 = vld [vmem:[#allocation9 + $0x1c8] sm:$0xff]
    %v789 = vld [vmem:[#allocation9 + $0x1d0] sm:$0xff]
    %v790 = vld [vmem:[#allocation9 + $0x1d8] sm:$0xff]
    %v791 = vld [vmem:[#allocation9 + $0x1e0] sm:$0xff]
    %v792 = vld [vmem:[#allocation9 + $0x1e8] sm:$0xff]
    %v793 = vld [vmem:[#allocation9 + $0x1f0] sm:$0xff]
    %v794 = vld [vmem:[#allocation9 + $0x1f8] sm:$0xff]
    %v795 = vld [vmem:[#allocation9 + $0x200] sm:$0xff]
    %v796 = vld [vmem:[#allocation9 + $0x208] sm:$0xff]
    %v797 = vld [vmem:[#allocation9 + $0x210] sm:$0xff]
    %v798 = vld [vmem:[#allocation9 + $0x218] sm:$0xff]
    %v799 = vld [vmem:[#allocation9 + $0x220] sm:$0xff]
    %v800 = vld [vmem:[#allocation9 + $0x228] sm:$0xff]
    %v801 = vld [vmem:[#allocation9 + $0x230] sm:$0xff]
    %v802 = vld [vmem:[#allocation9 + $0x238] sm:$0xff]
    %v803 = vld [vmem:[#allocation9 + $0x240] sm:$0xff]
    %v804 = vld [vmem:[#allocation9 + $0x248] sm:$0xff]
    %v805 = vld [vmem:[#allocation9 + $0x250] sm:$0xff]
    %v806 = vld [vmem:[#allocation9 + $0x258] sm:$0xff]
    %v807 = vld [vmem:[#allocation9 + $0x260] sm:$0xff]
    %v808 = vld [vmem:[#allocation9 + $0x268] sm:$0xff]
    %v809 = vld [vmem:[#allocation9 + $0x270] sm:$0xff]
    %v810 = vld [vmem:[#allocation9 + $0x278] sm:$0xff]
    %v811 = vld [vmem:[#allocation9 + $0x280] sm:$0xff]
    %v812 = vld [vmem:[#allocation9 + $0x288] sm:$0xff]
    %v813 = vld [vmem:[#allocation9 + $0x290] sm:$0xff]
    %v814 = vld [vmem:[#allocation9 + $0x298] sm:$0xff]
    %v815 = vld [vmem:[#allocation9 + $0x2a0] sm:$0xff]
    %v816 = vld [vmem:[#allocation9 + $0x2a8] sm:$0xff]
    %v817 = vld [vmem:[#allocation9 + $0x2b0] sm:$0xff]
    %v818 = vld [vmem:[#allocation9 + $0x2b8] sm:$0xff]
    %v819 = vld [vmem:[#allocation9 + $0x2c0] sm:$0xff]
    %v820 = vld [vmem:[#allocation9 + $0x2c8] sm:$0xff]
    %v821 = vld [vmem:[#allocation9 + $0x2d0] sm:$0xff]
    %v822 = vld [vmem:[#allocation9 + $0x2d8] sm:$0xff]
    %v823 = vld [vmem:[#allocation9 + $0x2e0] sm:$0xff]
    %v824 = vld [vmem:[#allocation9 + $0x2e8] sm:$0xff]
    %v825 = vld [vmem:[#allocation9 + $0x2f0] sm:$0xff]
    %v826 = vld [vmem:[#allocation9 + $0x2f8] sm:$0xff]
    %v827 = vld [vmem:[#allocation9 + $0x300] sm:$0xff]
    %v828 = vld [vmem:[#allocation9 + $0x308] sm:$0xff]
    %v829 = vld [vmem:[#allocation9 + $0x310] sm:$0xff]
    %v830 = vld [vmem:[#allocation9 + $0x318] sm:$0xff]
    %v831 = vld [vmem:[#allocation9 + $0x320] sm:$0xff]
    %v832 = vld [vmem:[#allocation9 + $0x328] sm:$0xff]
    %v833 = vld [vmem:[#allocation9 + $0x330] sm:$0xff]
    %v834 = vld [vmem:[#allocation9 + $0x338] sm:$0xff]
    %v835 = vld [vmem:[#allocation9 + $0x340] sm:$0xff]
    %v836 = vld [vmem:[#allocation9 + $0x348] sm:$0xff]
    %v837 = vld [vmem:[#allocation9 + $0x350] sm:$0xff]
    %v838 = vld [vmem:[#allocation9 + $0x358] sm:$0xff]
    %v839 = vld [vmem:[#allocation9 + $0x360] sm:$0xff]
    %v840 = vld [vmem:[#allocation9 + $0x368] sm:$0xff]
    %v841 = vld [vmem:[#allocation9 + $0x370] sm:$0xff]
    %v842 = vld [vmem:[#allocation9 + $0x378] sm:$0xff]
    %v843 = vld [vmem:[#allocation9 + $0x380] sm:$0xff]
    %v844 = vld [vmem:[#allocation9 + $0x388] sm:$0xff]
    %v845 = vld [vmem:[#allocation9 + $0x390] sm:$0xff]
    %v846 = vld [vmem:[#allocation9 + $0x398] sm:$0xff]
    %v847 = vld [vmem:[#allocation9 + $0x3a0] sm:$0xff]
    %v848 = vld [vmem:[#allocation9 + $0x3a8] sm:$0xff]
    %v849 = vld [vmem:[#allocation9 + $0x3b0] sm:$0xff]
    %v850 = vld [vmem:[#allocation9 + $0x3b8] sm:$0xff]
    %v851 = vld [vmem:[#allocation9 + $0x3c0] sm:$0xff]
    %v852 = vld [vmem:[#allocation9 + $0x3c8] sm:$0xff]
    %v853 = vld [vmem:[#allocation9 + $0x3d0] sm:$0xff]
    %v854 = vld [vmem:[#allocation9 + $0x3d8] sm:$0xff]
    %v855 = vld [vmem:[#allocation9 + $0x3e0] sm:$0xff]
    %v856 = vld [vmem:[#allocation9 + $0x3e8] sm:$0xff]
    %v857 = vld [vmem:[#allocation9 + $0x3f0] sm:$0xff]
    %v858 = vld [vmem:[#allocation9 + $0x3f8] sm:$0xff]
    %v859 = vld [vmem:[#allocation9 + $0x400] sm:$0xff]
    %v860 = vld [vmem:[#allocation9 + $0x408] sm:$0xff]
    %v861 = vld [vmem:[#allocation9 + $0x410] sm:$0xff]
    %v862 = vld [vmem:[#allocation9 + $0x418] sm:$0xff]
    %v863 = vld [vmem:[#allocation9 + $0x420] sm:$0xff]
    %v864 = vld [vmem:[#allocation9 + $0x428] sm:$0xff]
    %v865 = vld [vmem:[#allocation9 + $0x430] sm:$0xff]
    %v866 = vld [vmem:[#allocation9 + $0x438] sm:$0xff]
    %v867 = vld [vmem:[#allocation9 + $0x440] sm:$0xff]
    %v868 = vld [vmem:[#allocation9 + $0x448] sm:$0xff]
    %v869 = vld [vmem:[#allocation9 + $0x450] sm:$0xff]
    %v870 = vld [vmem:[#allocation9 + $0x458] sm:$0xff]
    %v871 = vld [vmem:[#allocation9 + $0x460] sm:$0xff]
    %v872 = vld [vmem:[#allocation9 + $0x468] sm:$0xff]
    %v873 = vld [vmem:[#allocation9 + $0x470] sm:$0xff]
    %v874 = vld [vmem:[#allocation9 + $0x478] sm:$0xff]
    %v875 = vld [vmem:[#allocation9 + $0x480] sm:$0xff]
    %v876 = vld [vmem:[#allocation9 + $0x488] sm:$0xff]
    %v877 = vld [vmem:[#allocation9 + $0x490] sm:$0xff]
    %v878 = vld [vmem:[#allocation9 + $0x498] sm:$0xff]
    %v879 = vld [vmem:[#allocation9 + $0x4a0] sm:$0xff]
    %v880 = vld [vmem:[#allocation9 + $0x4a8] sm:$0xff]
    %v881 = vld [vmem:[#allocation9 + $0x4b0] sm:$0xff]
    %v882 = vld [vmem:[#allocation9 + $0x4b8] sm:$0xff]
    %v883 = vld [vmem:[#allocation9 + $0x4c0] sm:$0xff]
    %v884 = vld [vmem:[#allocation9 + $0x4c8] sm:$0xff]
    %v885 = vld [vmem:[#allocation9 + $0x4d0] sm:$0xff]
    %v886 = vld [vmem:[#allocation9 + $0x4d8] sm:$0xff]
    %v887 = vld [vmem:[#allocation9 + $0x4e0] sm:$0xff]
    %v888 = vld [vmem:[#allocation9 + $0x4e8] sm:$0xff]
    %v889 = vld [vmem:[#allocation9 + $0x4f0] sm:$0xff]
    %v890 = vld [vmem:[#allocation9 + $0x4f8] sm:$0xff]
    %v891 = vld [vmem:[#allocation9 + $0x500] sm:$0xff]
    %v892 = vld [vmem:[#allocation9 + $0x508] sm:$0xff]
    %v893 = vld [vmem:[#allocation9 + $0x510] sm:$0xff]
    %v894 = vld [vmem:[#allocation9 + $0x518] sm:$0xff]
    %v895 = vld [vmem:[#allocation9 + $0x520] sm:$0xff]
    %v896 = vld [vmem:[#allocation9 + $0x528] sm:$0xff]
    %v897 = vld [vmem:[#allocation9 + $0x530] sm:$0xff]
    %v898 = vld [vmem:[#allocation9 + $0x538] sm:$0xff]
    %v899 = vld [vmem:[#allocation9 + $0x540] sm:$0xff]
    %v900 = vld [vmem:[#allocation9 + $0x548] sm:$0xff]
    %v901 = vld [vmem:[#allocation9 + $0x550] sm:$0xff]
    %v902 = vld [vmem:[#allocation9 + $0x558] sm:$0xff]
    %v903 = vld [vmem:[#allocation9 + $0x560] sm:$0xff]
    %v904 = vld [vmem:[#allocation9 + $0x568] sm:$0xff]
    %v905 = vld [vmem:[#allocation9 + $0x570] sm:$0xff]
    %v906 = vld [vmem:[#allocation9 + $0x578] sm:$0xff]
    %v907 = vld [vmem:[#allocation9 + $0x580] sm:$0xff]
    %v908 = vld [vmem:[#allocation9 + $0x588] sm:$0xff]
    %v909 = vld [vmem:[#allocation9 + $0x590] sm:$0xff]
    %v910 = vld [vmem:[#allocation9 + $0x598] sm:$0xff]
    %v911 = vld [vmem:[#allocation9 + $0x5a0] sm:$0xff]
    %v912 = vld [vmem:[#allocation9 + $0x5a8] sm:$0xff]
    %v913 = vld [vmem:[#allocation9 + $0x5b0] sm:$0xff]
    %v914 = vld [vmem:[#allocation9 + $0x5b8] sm:$0xff]
    %v915 = vld [vmem:[#allocation9 + $0x5c0] sm:$0xff]
    %v916 = vld [vmem:[#allocation9 + $0x5c8] sm:$0xff]
    %v917 = vld [vmem:[#allocation9 + $0x5d0] sm:$0xff]
    %v918 = vld [vmem:[#allocation9 + $0x5d8] sm:$0xff]
    %v919 = vld [vmem:[#allocation9 + $0x5e0] sm:$0xff]
    %v920 = vld [vmem:[#allocation9 + $0x5e8] sm:$0xff]
    %v921 = vld [vmem:[#allocation9 + $0x5f0] sm:$0xff]
    %v922 = vld [vmem:[#allocation9 + $0x5f8] sm:$0xff]
    %v923 = vld [vmem:[#allocation9 + $0x600] sm:$0xff]
    %v924 = vld [vmem:[#allocation9 + $0x608] sm:$0xff]
    %v925 = vld [vmem:[#allocation9 + $0x610] sm:$0xff]
    %v926 = vld [vmem:[#allocation9 + $0x618] sm:$0xff]
    %v927 = vld [vmem:[#allocation9 + $0x620] sm:$0xff]
    %v928 = vld [vmem:[#allocation9 + $0x628] sm:$0xff]
    %v929 = vld [vmem:[#allocation9 + $0x630] sm:$0xff]
    %v930 = vld [vmem:[#allocation9 + $0x638] sm:$0xff]
    %v931 = vld [vmem:[#allocation9 + $0x640] sm:$0xff]
    %v932 = vld [vmem:[#allocation9 + $0x648] sm:$0xff]
    %v933 = vld [vmem:[#allocation9 + $0x650] sm:$0xff]
    %v934 = vld [vmem:[#allocation9 + $0x658] sm:$0xff]
    %v935 = vld [vmem:[#allocation9 + $0x660] sm:$0xff]
    %v936 = vld [vmem:[#allocation9 + $0x668] sm:$0xff]
    %v937 = vld [vmem:[#allocation9 + $0x670] sm:$0xff]
    %v938 = vld [vmem:[#allocation9 + $0x678] sm:$0xff]
    %v939 = vld [vmem:[#allocation9 + $0x680] sm:$0xff]
    %v940 = vld [vmem:[#allocation9 + $0x688] sm:$0xff]
    %v941 = vld [vmem:[#allocation9 + $0x690] sm:$0xff]
    %v942 = vld [vmem:[#allocation9 + $0x698] sm:$0xff]
    %v943 = vld [vmem:[#allocation9 + $0x6a0] sm:$0xff]
    %v944 = vld [vmem:[#allocation9 + $0x6a8] sm:$0xff]
    %v945 = vld [vmem:[#allocation9 + $0x6b0] sm:$0xff]
    %v946 = vld [vmem:[#allocation9 + $0x6b8] sm:$0xff]
    %v947 = vld [vmem:[#allocation9 + $0x6c0] sm:$0xff]
    %v948 = vld [vmem:[#allocation9 + $0x6c8] sm:$0xff]
    %v949 = vld [vmem:[#allocation9 + $0x6d0] sm:$0xff]
    %v950 = vld [vmem:[#allocation9 + $0x6d8] sm:$0xff]
    %v951 = vld [vmem:[#allocation9 + $0x6e0] sm:$0xff]
    %v952 = vld [vmem:[#allocation9 + $0x6e8] sm:$0xff]
    %v953 = vld [vmem:[#allocation9 + $0x6f0] sm:$0xff]
    %v954 = vld [vmem:[#allocation9 + $0x6f8] sm:$0xff]
    %v955 = vld [vmem:[#allocation9 + $0x700] sm:$0xff]
    %v956 = vld [vmem:[#allocation9 + $0x708] sm:$0xff]
    %v957 = vld [vmem:[#allocation9 + $0x710] sm:$0xff]
    %v958 = vld [vmem:[#allocation9 + $0x718] sm:$0xff]
    %v959 = vld [vmem:[#allocation9 + $0x720] sm:$0xff]
    %v960 = vld [vmem:[#allocation9 + $0x728] sm:$0xff]
    %v961 = vld [vmem:[#allocation9 + $0x730] sm:$0xff]
    %v962 = vld [vmem:[#allocation9 + $0x738] sm:$0xff]
    %v963 = vld [vmem:[#allocation9 + $0x740] sm:$0xff]
    %v964 = vld [vmem:[#allocation9 + $0x748] sm:$0xff]
    %v965 = vld [vmem:[#allocation9 + $0x750] sm:$0xff]
    %v966 = vld [vmem:[#allocation9 + $0x758] sm:$0xff]
    %v967 = vld [vmem:[#allocation9 + $0x760] sm:$0xff]
    %v968 = vld [vmem:[#allocation9 + $0x768] sm:$0xff]
    %v969 = vld [vmem:[#allocation9 + $0x770] sm:$0xff]
    %v970 = vld [vmem:[#allocation9 + $0x778] sm:$0xff]
    %v971 = vld [vmem:[#allocation9 + $0x780] sm:$0xff]
    %v972 = vld [vmem:[#allocation9 + $0x788] sm:$0xff]
    %v973 = vld [vmem:[#allocation9 + $0x790] sm:$0xff]
    %v974 = vld [vmem:[#allocation9 + $0x798] sm:$0xff]
    %v975 = vld [vmem:[#allocation9 + $0x7a0] sm:$0xff]
    %v976 = vld [vmem:[#allocation9 + $0x7a8] sm:$0xff]
    %v977 = vld [vmem:[#allocation9 + $0x7b0] sm:$0xff]
    %v978 = vld [vmem:[#allocation9 + $0x7b8] sm:$0xff]
    %v979 = vld [vmem:[#allocation9 + $0x7c0] sm:$0xff]
    %v980 = vld [vmem:[#allocation9 + $0x7c8] sm:$0xff]
    %v981 = vld [vmem:[#allocation9 + $0x7d0] sm:$0xff]
    %v982 = vld [vmem:[#allocation9 + $0x7d8] sm:$0xff]
    %v983 = vld [vmem:[#allocation9 + $0x7e0] sm:$0xff]
    %v984 = vld [vmem:[#allocation9 + $0x7e8] sm:$0xff]
    %v985 = vld [vmem:[#allocation9 + $0x7f0] sm:$0xff]
    %v986 = vld [vmem:[#allocation9 + $0x7f8] sm:$0xff]
    %v987 = vld [vmem:[%s4] sm:$0x1]
    %v989 = vlaneseq
    %v990 = vshrl.u32 %v989, 7
    %v991 = vsub.s32 0, %v990
    %v992 = vrot.slane %v987, %v991
    %v998 = vcombine.high %v727, %v727
    %v1000 = vunpack.c.l.s4 1983009808
    %v1001 = vunpack.c.0.s8 %v1000
    %v1002 = vlaneseq
    %v1003 = vshrl.u32 %v1002, 7
    %v1004 = vsub.s32 %v1001, %v1003
    %v1005 = vrot.slane %v727, %v1004
    %v1007 = vunpack.c.l.s4 1983009808
    %v1008 = vunpack.c.0.s8 %v1007
    %v1009 = vlaneseq
    %v1010 = vshrl.u32 %v1009, 7
    %v1011 = vsub.s32 %v1008, %v1010
    %v1012 = vrot.slane %v998, %v1011
    %v1013 = vcombine.high %v1005, %v1005
    %v1014 = vcombine.high %v1012, %v1012
    %v1015 = vcombine.high %v728, %v728
    %v1017 = vunpack.c.l.s4 1983009808
    %v1018 = vunpack.c.0.s8 %v1017
    %v1019 = vlaneseq
    %v1020 = vshrl.u32 %v1019, 7
    %v1021 = vsub.s32 %v1018, %v1020
    %v1022 = vrot.slane %v728, %v1021
    %v1024 = vunpack.c.l.s4 1983009808
    %v1025 = vunpack.c.0.s8 %v1024
    %v1026 = vlaneseq
    %v1027 = vshrl.u32 %v1026, 7
    %v1028 = vsub.s32 %v1025, %v1027
    %v1029 = vrot.slane %v1015, %v1028
    %v1030 = vcombine.high %v1022, %v1022
    %v1031 = vcombine.high %v1029, %v1029
    %v1032 = vcombine.high %v729, %v729
    %v1034 = vunpack.c.l.s4 1983009808
    %v1035 = vunpack.c.0.s8 %v1034
    %v1036 = vlaneseq
    %v1037 = vshrl.u32 %v1036, 7
    %v1038 = vsub.s32 %v1035, %v1037
    %v1039 = vrot.slane %v729, %v1038
    %v1041 = vunpack.c.l.s4 1983009808
    %v1042 = vunpack.c.0.s8 %v1041
    %v1043 = vlaneseq
    %v1044 = vshrl.u32 %v1043, 7
    %v1045 = vsub.s32 %v1042, %v1044
    %v1046 = vrot.slane %v1032, %v1045
    %v1047 = vcombine.high %v1039, %v1039
    %v1048 = vcombine.high %v1046, %v1046
    %v1049 = vcombine.high %v730, %v730
    %v1051 = vunpack.c.l.s4 1983009808
    %v1052 = vunpack.c.0.s8 %v1051
    %v1053 = vlaneseq
    %v1054 = vshrl.u32 %v1053, 7
    %v1055 = vsub.s32 %v1052, %v1054
    %v1056 = vrot.slane %v730, %v1055
    %v1058 = vunpack.c.l.s4 1983009808
    %v1059 = vunpack.c.0.s8 %v1058
    %v1060 = vlaneseq
    %v1061 = vshrl.u32 %v1060, 7
    %v1062 = vsub.s32 %v1059, %v1061
    %v1063 = vrot.slane %v1049, %v1062
    %v1064 = vcombine.high %v1056, %v1056
    %v1065 = vcombine.high %v1063, %v1063
    %1082 = vmatprep.subr.mxu0 0.0
    %1083 = vmatpush1.msra.mxu0 %v731
    %1084 = vmatprep.subr.mxu0 0.0
    %1085 = vmatpush1.msra.mxu0 %v732
    %1086 = vmatprep.subr.mxu0 0.0
    %1087 = vmatpush1.msra.mxu0 %v733
    %1088 = vmatprep.subr.mxu0 0.0
    %1089 = vmatpush1.msra.mxu0 %v734
    %1090 = vmatprep.subr.mxu0 0.0
    %1091 = vmatpush1.msra.mxu0 %v735
    %1092 = vmatprep.subr.mxu0 0.0
    %1093 = vmatpush1.msra.mxu0 %v736
    %1094 = vmatprep.subr.mxu0 0.0
    %1095 = vmatpush1.msra.mxu0 %v737
    %1096 = vmatprep.subr.mxu0 0.0
    %1097 = vmatpush1.msra.mxu0 %v738
    %1098 = vmatprep.subr.mxu0 0.0
    %1099 = vmatpush1.msra.mxu0 %v739
    %1100 = vmatprep.subr.mxu0 0.0
    %1101 = vmatpush1.msra.mxu0 %v740
    %1102 = vmatprep.subr.mxu0 0.0
    %1103 = vmatpush1.msra.mxu0 %v741
    %1104 = vmatprep.subr.mxu0 0.0
    %1105 = vmatpush1.msra.mxu0 %v742
    %1106 = vmatprep.subr.mxu0 0.0
    %1107 = vmatpush1.msra.mxu0 %v743
    %1108 = vmatprep.subr.mxu0 0.0
    %1109 = vmatpush1.msra.mxu0 %v744
    %1110 = vmatprep.subr.mxu0 0.0
    %1111 = vmatpush1.msra.mxu0 %v745
    %1112 = vmatprep.subr.mxu0 0.0
    %1113 = vmatpush1.msra.mxu0 %v746
    %1114 = vmatprep.subr.mxu0 0.0
    %1115 = vmatpush1.msra.mxu0 %v747
    %1116 = vmatprep.subr.mxu0 0.0
    %1117 = vmatpush1.msra.mxu0 %v748
    %1118 = vmatprep.subr.mxu0 0.0
    %1119 = vmatpush1.msra.mxu0 %v749
    %1120 = vmatprep.subr.mxu0 0.0
    %1121 = vmatpush1.msra.mxu0 %v750
    %1122 = vmatprep.subr.mxu0 0.0
    %1123 = vmatpush1.msra.mxu0 %v751
    %1124 = vmatprep.subr.mxu0 0.0
    %1125 = vmatpush1.msra.mxu0 %v752
    %1126 = vmatprep.subr.mxu0 0.0
    %1127 = vmatpush1.msra.mxu0 %v753
    %1128 = vmatprep.subr.mxu0 0.0
    %1129 = vmatpush1.msra.mxu0 %v754
    %1130 = vmatprep.subr.mxu0 0.0
    %1131 = vmatpush1.msra.mxu0 %v755
    %1132 = vmatprep.subr.mxu0 0.0
    %1133 = vmatpush1.msra.mxu0 %v756
    %1134 = vmatprep.subr.mxu0 0.0
    %1135 = vmatpush1.msra.mxu0 %v757
    %1136 = vmatprep.subr.mxu0 0.0
    %1137 = vmatpush1.msra.mxu0 %v758
    %1138 = vmatprep.subr.mxu0 0.0
    %1139 = vmatpush1.msra.mxu0 %v759
    %1140 = vmatprep.subr.mxu0 0.0
    %1141 = vmatpush1.msra.mxu0 %v760
    %1142 = vmatprep.subr.mxu0 0.0
    %1143 = vmatpush1.msra.mxu0 %v761
    %1144 = vmatprep.subr.mxu0 0.0
    %1145 = vmatpush1.msra.mxu0 %v762
    %1146 = vmatprep.mubr.f32.mxu0 %v1013
    %1147 = vmatmul.mubr.f32.gmra.mrb[0].mxu0 %v1005
    %v1148 = vpop.f32.mrb[0].mxu0
    %v1149 = vadd.f32 %v992, %v1148
    %v1150 = vpop.f32.mrb[0].mxu0
    %1151 = vdwg.mxu0
    %1152 = vmatprep.subr.mxu0 0.0
    %1153 = vmatpush1.msra.mxu0 %v763
    %1154 = vmatprep.subr.mxu0 0.0
    %1155 = vmatpush1.msra.mxu0 %v764
    %1156 = vmatprep.subr.mxu0 0.0
    %1157 = vmatpush1.msra.mxu0 %v765
    %1158 = vmatprep.subr.mxu0 0.0
    %1159 = vmatpush1.msra.mxu0 %v766
    %1160 = vmatprep.subr.mxu0 0.0
    %1161 = vmatpush1.msra.mxu0 %v767
    %1162 = vmatprep.subr.mxu0 0.0
    %1163 = vmatpush1.msra.mxu0 %v768
    %1164 = vmatprep.subr.mxu0 0.0
    %1165 = vmatpush1.msra.mxu0 %v769
    %1166 = vmatprep.subr.mxu0 0.0
    %1167 = vmatpush1.msra.mxu0 %v770
    %1168 = vmatprep.subr.mxu0 0.0
    %1169 = vmatpush1.msra.mxu0 %v771
    %1170 = vmatprep.subr.mxu0 0.0
    %1171 = vmatpush1.msra.mxu0 %v772
    %1172 = vmatprep.subr.mxu0 0.0
    %1173 = vmatpush1.msra.mxu0 %v773
    %1174 = vmatprep.subr.mxu0 0.0
    %1175 = vmatpush1.msra.mxu0 %v774
    %1176 = vmatprep.subr.mxu0 0.0
    %1177 = vmatpush1.msra.mxu0 %v775
    %1178 = vmatprep.subr.mxu0 0.0
    %1179 = vmatpush1.msra.mxu0 %v776
    %1180 = vmatprep.subr.mxu0 0.0
    %1181 = vmatpush1.msra.mxu0 %v777
    %1182 = vmatprep.subr.mxu0 0.0
    %1183 = vmatpush1.msra.mxu0 %v778
    %1184 = vmatprep.subr.mxu0 0.0
    %1185 = vmatpush1.msra.mxu0 %v779
    %1186 = vmatprep.subr.mxu0 0.0
    %1187 = vmatpush1.msra.mxu0 %v780
    %1188 = vmatprep.subr.mxu0 0.0
    %1189 = vmatpush1.msra.mxu0 %v781
    %1190 = vmatprep.subr.mxu0 0.0
    %1191 = vmatpush1.msra.mxu0 %v782
    %1192 = vmatprep.subr.mxu0 0.0
    %1193 = vmatpush1.msra.mxu0 %v783
    %1194 = vmatprep.subr.mxu0 0.0
    %1195 = vmatpush1.msra.mxu0 %v784
    %1196 = vmatprep.subr.mxu0 0.0
    %1197 = vmatpush1.msra.mxu0 %v785
    %1198 = vmatprep.subr.mxu0 0.0
    %1199 = vmatpush1.msra.mxu0 %v786
    %1200 = vmatprep.subr.mxu0 0.0
    %1201 = vmatpush1.msra.mxu0 %v787
    %1202 = vmatprep.subr.mxu0 0.0
    %1203 = vmatpush1.msra.mxu0 %v788
    %1204 = vmatprep.subr.mxu0 0.0
    %1205 = vmatpush1.msra.mxu0 %v789
    %1206 = vmatprep.subr.mxu0 0.0
    %1207 = vmatpush1.msra.mxu0 %v790
    %1208 = vmatprep.subr.mxu0 0.0
    %1209 = vmatpush1.msra.mxu0 %v791
    %1210 = vmatprep.subr.mxu0 0.0
    %1211 = vmatpush1.msra.mxu0 %v792
    %1212 = vmatprep.subr.mxu0 0.0
    %1213 = vmatpush1.msra.mxu0 %v793
    %1214 = vmatprep.subr.mxu0 0.0
    %1215 = vmatpush1.msra.mxu0 %v794
    %1216 = vmatprep.mubr.f32.mxu0 %v1014
    %1217 = vmatmul.mubr.f32.gmra.mrb[0].mxu0 %v1012
    %v1218 = vpop.f32.mrb[0].mxu0
    %v1219 = vadd.f32 %v1149, %v1218
    %v1220 = vpop.f32.mrb[0].mxu0
    %1221 = vdwg.mxu0
    %1222 = vmatprep.subr.mxu0 0.0
    %1223 = vmatpush1.msra.mxu0 %v795
    %1224 = vmatprep.subr.mxu0 0.0
    %1225 = vmatpush1.msra.mxu0 %v796
    %1226 = vmatprep.subr.mxu0 0.0
    %1227 = vmatpush1.msra.mxu0 %v797
    %1228 = vmatprep.subr.mxu0 0.0
    %1229 = vmatpush1.msra.mxu0 %v798
    %1230 = vmatprep.subr.mxu0 0.0
    %1231 = vmatpush1.msra.mxu0 %v799
    %1232 = vmatprep.subr.mxu0 0.0
    %1233 = vmatpush1.msra.mxu0 %v800
    %1234 = vmatprep.subr.mxu0 0.0
    %1235 = vmatpush1.msra.mxu0 %v801
    %1236 = vmatprep.subr.mxu0 0.0
    %1237 = vmatpush1.msra.mxu0 %v802
    %1238 = vmatprep.subr.mxu0 0.0
    %1239 = vmatpush1.msra.mxu0 %v803
    %1240 = vmatprep.subr.mxu0 0.0
    %1241 = vmatpush1.msra.mxu0 %v804
    %1242 = vmatprep.subr.mxu0 0.0
    %1243 = vmatpush1.msra.mxu0 %v805
    %1244 = vmatprep.subr.mxu0 0.0
    %1245 = vmatpush1.msra.mxu0 %v806
    %1246 = vmatprep.subr.mxu0 0.0
    %1247 = vmatpush1.msra.mxu0 %v807
    %1248 = vmatprep.subr.mxu0 0.0
    %1249 = vmatpush1.msra.mxu0 %v808
    %1250 = vmatprep.subr.mxu0 0.0
    %1251 = vmatpush1.msra.mxu0 %v809
    %1252 = vmatprep.subr.mxu0 0.0
    %1253 = vmatpush1.msra.mxu0 %v810
    %1254 = vmatprep.subr.mxu0 0.0
    %1255 = vmatpush1.msra.mxu0 %v811
    %1256 = vmatprep.subr.mxu0 0.0
    %1257 = vmatpush1.msra.mxu0 %v812
    %1258 = vmatprep.subr.mxu0 0.0
    %1259 = vmatpush1.msra.mxu0 %v813
    %1260 = vmatprep.subr.mxu0 0.0
    %1261 = vmatpush1.msra.mxu0 %v814
    %1262 = vmatprep.subr.mxu0 0.0
    %1263 = vmatpush1.msra.mxu0 %v815
    %1264 = vmatprep.subr.mxu0 0.0
    %1265 = vmatpush1.msra.mxu0 %v816
    %1266 = vmatprep.subr.mxu0 0.0
    %1267 = vmatpush1.msra.mxu0 %v817
    %1268 = vmatprep.subr.mxu0 0.0
    %1269 = vmatpush1.msra.mxu0 %v818
    %1270 = vmatprep.subr.mxu0 0.0
    %1271 = vmatpush1.msra.mxu0 %v819
    %1272 = vmatprep.subr.mxu0 0.0
    %1273 = vmatpush1.msra.mxu0 %v820
    %1274 = vmatprep.subr.mxu0 0.0
    %1275 = vmatpush1.msra.mxu0 %v821
    %1276 = vmatprep.subr.mxu0 0.0
    %1277 = vmatpush1.msra.mxu0 %v822
    %1278 = vmatprep.subr.mxu0 0.0
    %1279 = vmatpush1.msra.mxu0 %v823
    %1280 = vmatprep.subr.mxu0 0.0
    %1281 = vmatpush1.msra.mxu0 %v824
    %1282 = vmatprep.subr.mxu0 0.0
    %1283 = vmatpush1.msra.mxu0 %v825
    %1284 = vmatprep.subr.mxu0 0.0
    %1285 = vmatpush1.msra.mxu0 %v826
    %1286 = vmatprep.mubr.f32.mxu0 %v1030
    %1287 = vmatmul.mubr.f32.gmra.mrb[0].mxu0 %v1022
    %v1288 = vpop.f32.mrb[0].mxu0
    %v1289 = vadd.f32 %v1219, %v1288
    %v1290 = vpop.f32.mrb[0].mxu0
    %1291 = vdwg.mxu0
    %1292 = vmatprep.subr.mxu0 0.0
    %1293 = vmatpush1.msra.mxu0 %v827
    %1294 = vmatprep.subr.mxu0 0.0
    %1295 = vmatpush1.msra.mxu0 %v828
    %1296 = vmatprep.subr.mxu0 0.0
    %1297 = vmatpush1.msra.mxu0 %v829
    %1298 = vmatprep.subr.mxu0 0.0
    %1299 = vmatpush1.msra.mxu0 %v830
    %1300 = vmatprep.subr.mxu0 0.0
    %1301 = vmatpush1.msra.mxu0 %v831
    %1302 = vmatprep.subr.mxu0 0.0
    %1303 = vmatpush1.msra.mxu0 %v832
    %1304 = vmatprep.subr.mxu0 0.0
    %1305 = vmatpush1.msra.mxu0 %v833
    %1306 = vmatprep.subr.mxu0 0.0
    %1307 = vmatpush1.msra.mxu0 %v834
    %1308 = vmatprep.subr.mxu0 0.0
    %1309 = vmatpush1.msra.mxu0 %v835
    %1310 = vmatprep.subr.mxu0 0.0
    %1311 = vmatpush1.msra.mxu0 %v836
    %1312 = vmatprep.subr.mxu0 0.0
    %1313 = vmatpush1.msra.mxu0 %v837
    %1314 = vmatprep.subr.mxu0 0.0
    %1315 = vmatpush1.msra.mxu0 %v838
    %1316 = vmatprep.subr.mxu0 0.0
    %1317 = vmatpush1.msra.mxu0 %v839
    %1318 = vmatprep.subr.mxu0 0.0
    %1319 = vmatpush1.msra.mxu0 %v840
    %1320 = vmatprep.subr.mxu0 0.0
    %1321 = vmatpush1.msra.mxu0 %v841
    %1322 = vmatprep.subr.mxu0 0.0
    %1323 = vmatpush1.msra.mxu0 %v842
    %1324 = vmatprep.subr.mxu0 0.0
    %1325 = vmatpush1.msra.mxu0 %v843
    %1326 = vmatprep.subr.mxu0 0.0
    %1327 = vmatpush1.msra.mxu0 %v844
    %1328 = vmatprep.subr.mxu0 0.0
    %1329 = vmatpush1.msra.mxu0 %v845
    %1330 = vmatprep.subr.mxu0 0.0
    %1331 = vmatpush1.msra.mxu0 %v846
    %1332 = vmatprep.subr.mxu0 0.0
    %1333 = vmatpush1.msra.mxu0 %v847
    %1334 = vmatprep.subr.mxu0 0.0
    %1335 = vmatpush1.msra.mxu0 %v848
    %1336 = vmatprep.subr.mxu0 0.0
    %1337 = vmatpush1.msra.mxu0 %v849
    %1338 = vmatprep.subr.mxu0 0.0
    %1339 = vmatpush1.msra.mxu0 %v850
    %1340 = vmatprep.subr.mxu0 0.0
    %1341 = vmatpush1.msra.mxu0 %v851
    %1342 = vmatprep.subr.mxu0 0.0
    %1343 = vmatpush1.msra.mxu0 %v852
    %1344 = vmatprep.subr.mxu0 0.0
    %1345 = vmatpush1.msra.mxu0 %v853
    %1346 = vmatprep.subr.mxu0 0.0
    %1347 = vmatpush1.msra.mxu0 %v854
    %1348 = vmatprep.subr.mxu0 0.0
    %1349 = vmatpush1.msra.mxu0 %v855
    %1350 = vmatprep.subr.mxu0 0.0
    %1351 = vmatpush1.msra.mxu0 %v856
    %1352 = vmatprep.subr.mxu0 0.0
    %1353 = vmatpush1.msra.mxu0 %v857
    %1354 = vmatprep.subr.mxu0 0.0
    %1355 = vmatpush1.msra.mxu0 %v858
    %1356 = vmatprep.mubr.f32.mxu0 %v1031
    %1357 = vmatmul.mubr.f32.gmra.mrb[0].mxu0 %v1029
    %v1358 = vpop.f32.mrb[0].mxu0
    %v1359 = vadd.f32 %v1289, %v1358
    %v1360 = vpop.f32.mrb[0].mxu0
    %1361 = vdwg.mxu0
    %1362 = vmatprep.subr.mxu0 0.0
    %1363 = vmatpush1.msra.mxu0 %v859
    %1364 = vmatprep.subr.mxu0 0.0
    %1365 = vmatpush1.msra.mxu0 %v860
    %1366 = vmatprep.subr.mxu0 0.0
    %1367 = vmatpush1.msra.mxu0 %v861
    %1368 = vmatprep.subr.mxu0 0.0
    %1369 = vmatpush1.msra.mxu0 %v862
    %1370 = vmatprep.subr.mxu0 0.0
    %1371 = vmatpush1.msra.mxu0 %v863
    %1372 = vmatprep.subr.mxu0 0.0
    %1373 = vmatpush1.msra.mxu0 %v864
    %1374 = vmatprep.subr.mxu0 0.0
    %1375 = vmatpush1.msra.mxu0 %v865
    %1376 = vmatprep.subr.mxu0 0.0
    %1377 = vmatpush1.msra.mxu0 %v866
    %1378 = vmatprep.subr.mxu0 0.0
    %1379 = vmatpush1.msra.mxu0 %v867
    %1380 = vmatprep.subr.mxu0 0.0
    %1381 = vmatpush1.msra.mxu0 %v868
    %1382 = vmatprep.subr.mxu0 0.0
    %1383 = vmatpush1.msra.mxu0 %v869
    %1384 = vmatprep.subr.mxu0 0.0
    %1385 = vmatpush1.msra.mxu0 %v870
    %1386 = vmatprep.subr.mxu0 0.0
    %1387 = vmatpush1.msra.mxu0 %v871
    %1388 = vmatprep.subr.mxu0 0.0
    %1389 = vmatpush1.msra.mxu0 %v872
    %1390 = vmatprep.subr.mxu0 0.0
    %1391 = vmatpush1.msra.mxu0 %v873
    %1392 = vmatprep.subr.mxu0 0.0
    %1393 = vmatpush1.msra.mxu0 %v874
    %1394 = vmatprep.subr.mxu0 0.0
    %1395 = vmatpush1.msra.mxu0 %v875
    %1396 = vmatprep.subr.mxu0 0.0
    %1397 = vmatpush1.msra.mxu0 %v876
    %1398 = vmatprep.subr.mxu0 0.0
    %1399 = vmatpush1.msra.mxu0 %v877
    %1400 = vmatprep.subr.mxu0 0.0
    %1401 = vmatpush1.msra.mxu0 %v878
    %1402 = vmatprep.subr.mxu0 0.0
    %1403 = vmatpush1.msra.mxu0 %v879
    %1404 = vmatprep.subr.mxu0 0.0
    %1405 = vmatpush1.msra.mxu0 %v880
    %1406 = vmatprep.subr.mxu0 0.0
    %1407 = vmatpush1.msra.mxu0 %v881
    %1408 = vmatprep.subr.mxu0 0.0
    %1409 = vmatpush1.msra.mxu0 %v882
    %1410 = vmatprep.subr.mxu0 0.0
    %1411 = vmatpush1.msra.mxu0 %v883
    %1412 = vmatprep.subr.mxu0 0.0
    %1413 = vmatpush1.msra.mxu0 %v884
    %1414 = vmatprep.subr.mxu0 0.0
    %1415 = vmatpush1.msra.mxu0 %v885
    %1416 = vmatprep.subr.mxu0 0.0
    %1417 = vmatpush1.msra.mxu0 %v886
    %1418 = vmatprep.subr.mxu0 0.0
    %1419 = vmatpush1.msra.mxu0 %v887
    %1420 = vmatprep.subr.mxu0 0.0
    %1421 = vmatpush1.msra.mxu0 %v888
    %1422 = vmatprep.subr.mxu0 0.0
    %1423 = vmatpush1.msra.mxu0 %v889
    %1424 = vmatprep.subr.mxu0 0.0
    %1425 = vmatpush1.msra.mxu0 %v890
    %1426 = vmatprep.mubr.f32.mxu0 %v1047
    %1427 = vmatmul.mubr.f32.gmra.mrb[0].mxu0 %v1039
    %v1428 = vpop.f32.mrb[0].mxu0
    %v1429 = vadd.f32 %v1359, %v1428
    %v1430 = vpop.f32.mrb[0].mxu0
    %1431 = vdwg.mxu0
    %1432 = vmatprep.subr.mxu0 0.0
    %1433 = vmatpush1.msra.mxu0 %v891
    %1434 = vmatprep.subr.mxu0 0.0
    %1435 = vmatpush1.msra.mxu0 %v892
    %1436 = vmatprep.subr.mxu0 0.0
    %1437 = vmatpush1.msra.mxu0 %v893
    %1438 = vmatprep.subr.mxu0 0.0
    %1439 = vmatpush1.msra.mxu0 %v894
    %1440 = vmatprep.subr.mxu0 0.0
    %1441 = vmatpush1.msra.mxu0 %v895
    %1442 = vmatprep.subr.mxu0 0.0
    %1443 = vmatpush1.msra.mxu0 %v896
    %1444 = vmatprep.subr.mxu0 0.0
    %1445 = vmatpush1.msra.mxu0 %v897
    %1446 = vmatprep.subr.mxu0 0.0
    %1447 = vmatpush1.msra.mxu0 %v898
    %1448 = vmatprep.subr.mxu0 0.0
    %1449 = vmatpush1.msra.mxu0 %v899
    %1450 = vmatprep.subr.mxu0 0.0
    %1451 = vmatpush1.msra.mxu0 %v900
    %1452 = vmatprep.subr.mxu0 0.0
    %1453 = vmatpush1.msra.mxu0 %v901
    %1454 = vmatprep.subr.mxu0 0.0
    %1455 = vmatpush1.msra.mxu0 %v902
    %1456 = vmatprep.subr.mxu0 0.0
    %1457 = vmatpush1.msra.mxu0 %v903
    %1458 = vmatprep.subr.mxu0 0.0
    %1459 = vmatpush1.msra.mxu0 %v904
    %1460 = vmatprep.subr.mxu0 0.0
    %1461 = vmatpush1.msra.mxu0 %v905
    %1462 = vmatprep.subr.mxu0 0.0
    %1463 = vmatpush1.msra.mxu0 %v906
    %1464 = vmatprep.subr.mxu0 0.0
    %1465 = vmatpush1.msra.mxu0 %v907
    %1466 = vmatprep.subr.mxu0 0.0
    %1467 = vmatpush1.msra.mxu0 %v908
    %1468 = vmatprep.subr.mxu0 0.0
    %1469 = vmatpush1.msra.mxu0 %v909
    %1470 = vmatprep.subr.mxu0 0.0
    %1471 = vmatpush1.msra.mxu0 %v910
    %1472 = vmatprep.subr.mxu0 0.0
    %1473 = vmatpush1.msra.mxu0 %v911
    %1474 = vmatprep.subr.mxu0 0.0
    %1475 = vmatpush1.msra.mxu0 %v912
    %1476 = vmatprep.subr.mxu0 0.0
    %1477 = vmatpush1.msra.mxu0 %v913
    %1478 = vmatprep.subr.mxu0 0.0
    %1479 = vmatpush1.msra.mxu0 %v914
    %1480 = vmatprep.subr.mxu0 0.0
    %1481 = vmatpush1.msra.mxu0 %v915
    %1482 = vmatprep.subr.mxu0 0.0
    %1483 = vmatpush1.msra.mxu0 %v916
    %1484 = vmatprep.subr.mxu0 0.0
    %1485 = vmatpush1.msra.mxu0 %v917
    %1486 = vmatprep.subr.mxu0 0.0
    %1487 = vmatpush1.msra.mxu0 %v918
    %1488 = vmatprep.subr.mxu0 0.0
    %1489 = vmatpush1.msra.mxu0 %v919
    %1490 = vmatprep.subr.mxu0 0.0
    %1491 = vmatpush1.msra.mxu0 %v920
    %1492 = vmatprep.subr.mxu0 0.0
    %1493 = vmatpush1.msra.mxu0 %v921
    %1494 = vmatprep.subr.mxu0 0.0
    %1495 = vmatpush1.msra.mxu0 %v922
    %1496 = vmatprep.mubr.f32.mxu0 %v1048
    %1497 = vmatmul.mubr.f32.gmra.mrb[0].mxu0 %v1046
    %v1498 = vpop.f32.mrb[0].mxu0
    %v1499 = vadd.f32 %v1429, %v1498
    %v1500 = vpop.f32.mrb[0].mxu0
    %1501 = vdwg.mxu0
    %1502 = vmatprep.subr.mxu0 0.0
    %1503 = vmatpush1.msra.mxu0 %v923
    %1504 = vmatprep.subr.mxu0 0.0
    %1505 = vmatpush1.msra.mxu0 %v924
    %1506 = vmatprep.subr.mxu0 0.0
    %1507 = vmatpush1.msra.mxu0 %v925
    %1508 = vmatprep.subr.mxu0 0.0
    %1509 = vmatpush1.msra.mxu0 %v926
    %1510 = vmatprep.subr.mxu0 0.0
    %1511 = vmatpush1.msra.mxu0 %v927
    %1512 = vmatprep.subr.mxu0 0.0
    %1513 = vmatpush1.msra.mxu0 %v928
    %1514 = vmatprep.subr.mxu0 0.0
    %1515 = vmatpush1.msra.mxu0 %v929
    %1516 = vmatprep.subr.mxu0 0.0
    %1517 = vmatpush1.msra.mxu0 %v930
    %1518 = vmatprep.subr.mxu0 0.0
    %1519 = vmatpush1.msra.mxu0 %v931
    %1520 = vmatprep.subr.mxu0 0.0
    %1521 = vmatpush1.msra.mxu0 %v932
    %1522 = vmatprep.subr.mxu0 0.0
    %1523 = vmatpush1.msra.mxu0 %v933
    %1524 = vmatprep.subr.mxu0 0.0
    %1525 = vmatpush1.msra.mxu0 %v934
    %1526 = vmatprep.subr.mxu0 0.0
    %1527 = vmatpush1.msra.mxu0 %v935
    %1528 = vmatprep.subr.mxu0 0.0
    %1529 = vmatpush1.msra.mxu0 %v936
    %1530 = vmatprep.subr.mxu0 0.0
    %1531 = vmatpush1.msra.mxu0 %v937
    %1532 = vmatprep.subr.mxu0 0.0
    %1533 = vmatpush1.msra.mxu0 %v938
    %1534 = vmatprep.subr.mxu0 0.0
    %1535 = vmatpush1.msra.mxu0 %v939
    %1536 = vmatprep.subr.mxu0 0.0
    %1537 = vmatpush1.msra.mxu0 %v940
    %1538 = vmatprep.subr.mxu0 0.0
    %1539 = vmatpush1.msra.mxu0 %v941
    %1540 = vmatprep.subr.mxu0 0.0
    %1541 = vmatpush1.msra.mxu0 %v942
    %1542 = vmatprep.subr.mxu0 0.0
    %1543 = vmatpush1.msra.mxu0 %v943
    %1544 = vmatprep.subr.mxu0 0.0
    %1545 = vmatpush1.msra.mxu0 %v944
    %1546 = vmatprep.subr.mxu0 0.0
    %1547 = vmatpush1.msra.mxu0 %v945
    %1548 = vmatprep.subr.mxu0 0.0
    %1549 = vmatpush1.msra.mxu0 %v946
    %1550 = vmatprep.subr.mxu0 0.0
    %1551 = vmatpush1.msra.mxu0 %v947
    %1552 = vmatprep.subr.mxu0 0.0
    %1553 = vmatpush1.msra.mxu0 %v948
    %1554 = vmatprep.subr.mxu0 0.0
    %1555 = vmatpush1.msra.mxu0 %v949
    %1556 = vmatprep.subr.mxu0 0.0
    %1557 = vmatpush1.msra.mxu0 %v950
    %1558 = vmatprep.subr.mxu0 0.0
    %1559 = vmatpush1.msra.mxu0 %v951
    %1560 = vmatprep.subr.mxu0 0.0
    %1561 = vmatpush1.msra.mxu0 %v952
    %1562 = vmatprep.subr.mxu0 0.0
    %1563 = vmatpush1.msra.mxu0 %v953
    %1564 = vmatprep.subr.mxu0 0.0
    %1565 = vmatpush1.msra.mxu0 %v954
    %1566 = vmatprep.mubr.f32.mxu0 %v1064
    %1567 = vmatmul.mubr.f32.gmra.mrb[0].mxu0 %v1056
    %v1568 = vpop.f32.mrb[0].mxu0
    %v1569 = vadd.f32 %v1499, %v1568
    %v1570 = vpop.f32.mrb[0].mxu0
    %1571 = vdwg.mxu0
    %1572 = vmatprep.subr.mxu0 0.0
    %1573 = vmatpush1.msra.mxu0 %v955
    %1574 = vmatprep.subr.mxu0 0.0
    %1575 = vmatpush1.msra.mxu0 %v956
    %1576 = vmatprep.subr.mxu0 0.0
    %1577 = vmatpush1.msra.mxu0 %v957
    %1578 = vmatprep.subr.mxu0 0.0
    %1579 = vmatpush1.msra.mxu0 %v958
    %1580 = vmatprep.subr.mxu0 0.0
    %1581 = vmatpush1.msra.mxu0 %v959
    %1582 = vmatprep.subr.mxu0 0.0
    %1583 = vmatpush1.msra.mxu0 %v960
    %1584 = vmatprep.subr.mxu0 0.0
    %1585 = vmatpush1.msra.mxu0 %v961
    %1586 = vmatprep.subr.mxu0 0.0
    %1587 = vmatpush1.msra.mxu0 %v962
    %1588 = vmatprep.subr.mxu0 0.0
    %1589 = vmatpush1.msra.mxu0 %v963
    %1590 = vmatprep.subr.mxu0 0.0
    %1591 = vmatpush1.msra.mxu0 %v964
    %1592 = vmatprep.subr.mxu0 0.0
    %1593 = vmatpush1.msra.mxu0 %v965
    %1594 = vmatprep.subr.mxu0 0.0
    %1595 = vmatpush1.msra.mxu0 %v966
    %1596 = vmatprep.subr.mxu0 0.0
    %1597 = vmatpush1.msra.mxu0 %v967
    %1598 = vmatprep.subr.mxu0 0.0
    %1599 = vmatpush1.msra.mxu0 %v968
    %1600 = vmatprep.subr.mxu0 0.0
    %1601 = vmatpush1.msra.mxu0 %v969
    %1602 = vmatprep.subr.mxu0 0.0
    %1603 = vmatpush1.msra.mxu0 %v970
    %1604 = vmatprep.subr.mxu0 0.0
    %1605 = vmatpush1.msra.mxu0 %v971
    %1606 = vmatprep.subr.mxu0 0.0
    %1607 = vmatpush1.msra.mxu0 %v972
    %1608 = vmatprep.subr.mxu0 0.0
    %1609 = vmatpush1.msra.mxu0 %v973
    %1610 = vmatprep.subr.mxu0 0.0
    %1611 = vmatpush1.msra.mxu0 %v974
    %1612 = vmatprep.subr.mxu0 0.0
    %1613 = vmatpush1.msra.mxu0 %v975
    %1614 = vmatprep.subr.mxu0 0.0
    %1615 = vmatpush1.msra.mxu0 %v976
    %1616 = vmatprep.subr.mxu0 0.0
    %1617 = vmatpush1.msra.mxu0 %v977
    %1618 = vmatprep.subr.mxu0 0.0
    %1619 = vmatpush1.msra.mxu0 %v978
    %1620 = vmatprep.subr.mxu0 0.0
    %1621 = vmatpush1.msra.mxu0 %v979
    %1622 = vmatprep.subr.mxu0 0.0
    %1623 = vmatpush1.msra.mxu0 %v980
    %1624 = vmatprep.subr.mxu0 0.0
    %1625 = vmatpush1.msra.mxu0 %v981
    %1626 = vmatprep.subr.mxu0 0.0
    %1627 = vmatpush1.msra.mxu0 %v982
    %1628 = vmatprep.subr.mxu0 0.0
    %1629 = vmatpush1.msra.mxu0 %v983
    %1630 = vmatprep.subr.mxu0 0.0
    %1631 = vmatpush1.msra.mxu0 %v984
    %1632 = vmatprep.subr.mxu0 0.0
    %1633 = vmatpush1.msra.mxu0 %v985
    %1634 = vmatprep.subr.mxu0 0.0
    %1635 = vmatpush1.msra.mxu0 %v986
    %1636 = vmatprep.mubr.f32.mxu0 %v1065
    %1637 = vmatmul.mubr.f32.gmra.mrb[0].mxu0 %v1063
    %v1638 = vpop.f32.mrb[0].mxu0
    %v1639 = vadd.f32 %v1569, %v1638
    %v1640 = vpop.f32.mrb[0].mxu0
    %1641 = vdwg.mxu0
    %1642 = vst [vmem:[#allocation10] sm:$0x3] %v1639
    // Predicated region
    $region34: #{forward.1} parent=1 // pred_check
      _
    $region35: #{forward.1} parent=1 // pred_check_branch
      %1644 = sbr.rel (0) target = $region37
    $region36: #{forward.1} parent=1 // pred_region
      %s1646 = ssub.s32 32, 32
      %1647 = vsyncadd [#allocation6], %s1646
      %s1649 = sshll.u32 [#allocation10], 4
      %s1650 = int_to_ptr.vmem [resolvable:$true] %s1649
      %1652 = dma.vmem_to_hbm [thread:$0]  %s1650, 32, %s5, [#allocation6]
    $region37: #{forward.1} parent=1 // pred_fallthru
      _
    // Predicated region
    $region38: #{forward.1} parent=1 // pred_check
      _
    $region39: #{forward.1} parent=1 // pred_check_branch
      %1654 = sbr.rel (0) target = $region41
    $region40: #{forward.1} parent=1 // pred_region
      %1655 = dma.done [#allocation6], 32
    $region41: #{forward.1} parent=1 // pred_fallthru
      _
    %1656 = vsyncpa [#allocation5], 1
    %1657 = vsyncpa [#allocation8], 1
    %1658 = vsyncpa [#allocation6], 1

</llo_original>
